<compile_context>
chip_gen: v5e
topology: v5e:2x2
jax: 0.10.0
libtpu: 0.0.40
codegen_flags: <defaults>
</compile_context>

<pallas_src>
import jax
import jax.numpy as jnp
from jax import lax
from jax.experimental import pallas as pl
from jax.experimental.pallas import tpu as pltpu


_GRAY = (0.2989, 0.587, 0.114)          # torchvision rgb_to_grayscale weights

# Static invariant for the roll-based conv2 input shifts: valid pool2 outputs
# have m,n <= 5 (lane_local <= 45) and the largest shift is 2*8 + 2 = 18, so
# 45 + 18 = 63 < 64 -- shifted reads for *valid* lanes never cross the
# batch-0/batch-1 lane boundary and never wrap; wrapped/garbage values only
# land in lanes whose fc1 weights are zero-padded.
assert 45 + 18 < 64


# ------------------------------ Pallas kernel -------------------------------

def _cnn_kernel(p1_ref, w1_ref, b1_ref, w2_ref, b2_ref, w1p_ref, fc1b_ref,
                fc2w_ref, fc2b_ref, out_ref):
    """Whole CNNModel forward (minus the input patch gather) in VMEM."""
    f32 = jnp.float32

    # ---- conv1: 7x7 stride 3, 1->8(padded) channels, + bias + ReLU ---------
    # p1_ref: (49, 2048); column = phase*128 + b*64 + i*8 + j with
    # phase = r4*4 + c4 and conv1 output pixel (ho, wo) = (4*i+r4, 4*j+c4).
    y1 = jnp.dot(w1_ref[...], p1_ref[...], preferred_element_type=f32)
    y1 = jnp.maximum(y1 + b1_ref[...], 0.0)                       # (8, 2048)
    phases = [y1[:, p * 128:(p + 1) * 128] for p in range(16)]    # lane-aligned

    # ---- pool1: 2x2/2 max = elementwise max over 4 conv1 phases ------------
    # a1[s][t][co, b*64+i*8+j] = pool1_out[b, co, 2*i+s, 2*j+t]   -- (8, 128)
    a1 = [[None, None], [None, None]]
    for s in range(2):
        for t in range(2):
            ps = [(2 * s + dr) * 4 + (2 * t + dc)
                  for dr in (0, 1) for dc in (0, 1)]
            a1[s][t] = jnp.maximum(jnp.maximum(phases[ps[0]], phases[ps[1]]),
                                   jnp.maximum(phases[ps[2]], phases[ps[3]]))

    # ---- conv2 input assembly: memoized XLU lane rolls ---------------------
    # rolled_a1(vv, uu)[ci, L] = a1[vv%2][uu%2][ci, L + (vv//2)*8 + (uu//2)]
    # (circular; wrap only contaminates fc1-zero-masked lanes, see assert).
    rolled = {}

    def rolled_a1(vv, uu):
        key = (vv, uu)
        if key not in rolled:
            k = (vv // 2) * 8 + (uu // 2)
            src = a1[vv % 2][uu % 2]
            rolled[key] = src if k == 0 else pltpu.roll(src, shift=128 - k,
                                                        axis=1)
        return rolled[key]

    # ---- conv2: 4x4, 6->12 channels, all 4 output phases in ONE MXU dot ----
    # s2 phase (e,f) rows: (kh*4 + kw)*8 + ci, tile-aligned (8-row groups).
    s2_cols = []
    for e in range(2):
        for f in range(2):
            pieces = [rolled_a1(e + kh, f + kw)
                      for kh in range(4) for kw in range(4)]
            s2_cols.append(jnp.concatenate(pieces, axis=0))       # (128, 128)
    s2_all = jnp.concatenate(s2_cols, axis=1)                     # (128, 512)
    raw2 = jnp.dot(w2_ref[...], s2_all, preferred_element_type=f32)  # (12,512)

    # ---- pool2 (max over the 4 conv2 phases), then bias + ReLU once --------
    o = [raw2[:, p * 128:(p + 1) * 128] for p in range(4)]
    pool2 = jnp.maximum(jnp.maximum(o[0], o[1]), jnp.maximum(o[2], o[3]))
    pool2 = jnp.maximum(pool2 + b2_ref[...], 0.0)                 # (12, 128)

    # ---- flatten to (2, 768) with column = d*64 + m*8 + n, single fc1 dot --
    half0 = pool2[:, 0:64]                                        # batch 0
    half1 = pool2[:, 64:128]                                      # batch 1
    xb = jnp.concatenate(
        [jnp.concatenate([half0[d:d + 1, :], half1[d:d + 1, :]], axis=0)
         for d in range(12)], axis=1)                             # (2, 768)
    h1 = jnp.maximum(jnp.dot(xb, w1p_ref[...], preferred_element_type=f32)
                     + fc1b_ref[...], 0.0)                        # (2, 216)

    # ---- dropout = identity at inference; fc2 ------------------------------
    # (n_out = 1 here; if the head ever widens, pad n_out to 128 lanes for an
    #  unmasked store and slice in the wrapper.)
    out_ref[...] = (jnp.dot(h1, fc2w_ref[...], preferred_element_type=f32)
                    + fc2b_ref[...])                              # (2, n_out)


# ------------------------- wrapper: layout plumbing --------------------------

def pack_params(params):
    """One-time repack of PyTorch-layout weights into the kernel layout.

    Call this ONCE at init (outside the jitted forward) -- none of this work
    should run per call.
    """
    # conv1: (6,1,7,7) -> (8,49) zero-padded output channels; bias -> (8,1).
    w1f = jnp.pad(params["conv1_w"].reshape(6, 49), ((0, 2), (0, 0)))
    b1 = jnp.pad(params["conv1_b"], (0, 2)).reshape(8, 1)
    # conv2: (12,6,4,4) -> [d, kh, kw, ci], ci padded 6->8 -> (12, 128).
    w2 = jnp.transpose(params["conv2_w"], (0, 2, 3, 1))
    w2f = jnp.pad(w2, ((0, 0), (0, 0), (0, 0), (0, 2))).reshape(12, 128)
    b2 = params["conv2_b"].reshape(12, 1)
    # fc1: (216, 12*6*6) NCHW flatten -> (12,8,8) zero-padded spatial block
    # (masks the invalid lanes) -> (768, 216) with row = d*64 + m*8 + n.
    w1p = params["fc1_w"].reshape(216, 12, 6, 6)
    w1p = jnp.pad(w1p, ((0, 0), (0, 0), (0, 2), (0, 2)))
    w1p = jnp.transpose(w1p, (1, 2, 3, 0)).reshape(768, 216)
    fc1b = params["fc1_b"].reshape(1, 216)
    fc2w = jnp.transpose(params["fc2_w"])                          # (216, A)
    fc2b = params["fc2_b"].reshape(1, -1)
    return (w1f, b1, w2f, b2, w1p, fc1b, fc2w, fc2b)


def _conv1_patches(x):
    """(2,100,100,3) NHWC -> (49, 2048) conv1 patch matrix.

    Grayscale (linear) + the stride-3 im2col, done once in XLA (lane-strided
    gathers have no efficient in-kernel TPU vector equivalent).  Column =
    (r4*4+c4)*128 + b*64 + i*8 + j, row = kh*7+kw, value =
    gray(x)[b, 3*(4*i+r4)+kh, 3*(4*j+c4)+kw].
    """
    gr, gg, gb = _GRAY
    xg = gr * x[..., 0] + gg * x[..., 1] + gb * x[..., 2]          # (2,100,100)
    patches = lax.conv_general_dilated_patches(
        xg[:, None, :, :], filter_shape=(7, 7), window_strides=(3, 3),
        padding="VALID", dimension_numbers=("NCHW", "OIHW", "NCHW"))
    # patches[b, kh*7+kw, ho, wo] = xg[b, 3*ho+kh, 3*wo+kw]          (2,49,32,32)
    t = patches.reshape(2, 49, 8, 4, 8, 4)                  # [b, k, i, r4, j, c4]
    t = jnp.transpose(t, (1, 3, 5, 0, 2, 4))                # [k, r4, c4, b, i, j]
    return t.reshape(49, 2048)


def cnn_forward(packed, x):
    # x: (2, 100, 100, 3) f32 NHWC (the PyTorch module permutes to NCHW and
    # grayscales internally; 100x100 is forced by fc1's 12*6*6 input features).
    assert x.shape == (2, 100, 100, 3), "kernel packs batch=2 into the lanes"
    p1 = _conv1_patches(x)
    n_out = packed[6].shape[1]
    vmem = pl.BlockSpec(memory_space=pltpu.MemorySpace.VMEM)
    return pl.pallas_call(
        _cnn_kernel,
        out_shape=jax.ShapeDtypeStruct((2, n_out), jnp.float32),
        in_specs=[vmem] * 9,
        out_specs=vmem,
    )(p1, *packed)


# ------------------------------ pure-XLA reference ---------------------------

def _reference_forward(params, x):
    """Plain-JAX reference of the PyTorch forward (inference; dropout = id)."""
    gr, gg, gb = _GRAY
    xg = (gr * x[..., 0] + gg * x[..., 1] + gb * x[..., 2])[:, None]
    dn = ("NCHW", "OIHW", "NCHW")
    y = lax.conv_general_dilated(xg, params["conv1_w"], (3, 3), "VALID",
                                 dimension_numbers=dn)
    y = jnp.maximum(y + params["conv1_b"][None, :, None, None], 0.0)
    y = lax.reduce_window(y, -jnp.inf, lax.max, (1, 1, 2, 2), (1, 1, 2, 2),
                          "VALID")
    y = lax.conv_general_dilated(y, params["conv2_w"], (1, 1), "VALID",
                                 dimension_numbers=dn)
    y = jnp.maximum(y + params["conv2_b"][None, :, None, None], 0.0)
    y = lax.reduce_window(y, -jnp.inf, lax.max, (1, 1, 2, 2), (1, 1, 2, 2),
                          "VALID")
    y = y.reshape(y.shape[0], -1)
    y = jnp.maximum(y @ params["fc1_w"].T + params["fc1_b"], 0.0)
    return y @ params["fc2_w"].T + params["fc2_b"]


# --------------------------------- main --------------------------------------

if __name__ == "__main__":
    key = jax.random.PRNGKey(0)
    keys = jax.random.split(key, 9)

    def u(k, shape, fan_in):
        bound = 1.0 / float(fan_in) ** 0.5
        return jax.random.uniform(k, shape, jnp.float32, -bound, bound)

    # Deterministic synthetic parameters (PyTorch default-init-like ranges),
    # len_action_space = 1.
    params = {
        "conv1_w": u(keys[0], (6, 1, 7, 7), 1 * 7 * 7),
        "conv1_b": u(keys[1], (6,), 1 * 7 * 7),
        "conv2_w": u(keys[2], (12, 6, 4, 4), 6 * 4 * 4),
        "conv2_b": u(keys[3], (12,), 6 * 4 * 4),
        "fc1_w":   u(keys[4], (216, 432), 432),
        "fc1_b":   u(keys[5], (216,), 432),
        "fc2_w":   u(keys[6], (1, 216), 216),
        "fc2_b":   u(keys[7], (1,), 216),
    }

    # Spatial size 100x100 is forced by fc1's 12*6*6 = 432 input features:
    # 100 -conv7/s3-> 32 -pool2-> 16 -conv4-> 13 -pool2-> 6.
    x = jax.random.uniform(keys[8], (2, 100, 100, 3), jnp.float32)

    packed = pack_params(params)                 # one-time, outside the jit
    fwd = jax.jit(cnn_forward)
    out = jax.block_until_ready(fwd(packed, x))
    assert out.shape == (2, 1) and out.dtype == jnp.float32

    ref = _reference_forward(params, x)
    err = float(jnp.max(jnp.abs(out - ref)))
    assert err < 2e-2, f"kernel/reference mismatch: max|diff| = {err}"

    print("KERNEL_OK")
</pallas_src>

<mosaic_0001>
module attributes {stable_mosaic.version = 11 : i64} {
  func.func @_cnn_kernel(%arg0: memref<49x2048xf32, #tpu.memory_space<vmem>>, %arg1: memref<8x49xf32, #tpu.memory_space<vmem>>, %arg2: memref<8x1xf32, #tpu.memory_space<vmem>>, %arg3: memref<12x128xf32, #tpu.memory_space<vmem>>, %arg4: memref<12x1xf32, #tpu.memory_space<vmem>>, %arg5: memref<768x216xf32, #tpu.memory_space<vmem>>, %arg6: memref<1x216xf32, #tpu.memory_space<vmem>>, %arg7: memref<216x1xf32, #tpu.memory_space<vmem>>, %arg8: memref<1x1xf32, #tpu.memory_space<vmem>>, %arg9: memref<2x1xf32, #tpu.memory_space<vmem>>) attributes {dimension_semantics = [], scalar_prefetch = 0 : i64, scratch_operands = 0 : i64, tpu.core_type = #tpu.core_type<tc>} {
    %c0 = arith.constant 0 : index
    %c0_0 = arith.constant 0 : index
    %0 = vector.load %arg1[%c0, %c0_0] : memref<8x49xf32, #tpu.memory_space<vmem>>, vector<8x49xf32>
    %c0_1 = arith.constant 0 : index
    %c0_2 = arith.constant 0 : index
    %1 = vector.load %arg0[%c0_1, %c0_2] : memref<49x2048xf32, #tpu.memory_space<vmem>>, vector<49x2048xf32>
    %cst = arith.constant dense<0.000000e+00> : vector<8x2048xf32>
    %2 = tpu.matmul %0, %1, %cst {dimension_numbers = #tpu.dot_dimension_numbers<[1], [0], [0], [1], [0, 0, 1, 1], [], []>} : vector<8x49xf32>, vector<49x2048xf32>, vector<8x2048xf32> -> vector<8x2048xf32>
    %c0_3 = arith.constant 0 : index
    %c0_4 = arith.constant 0 : index
    %3 = vector.load %arg2[%c0_3, %c0_4] : memref<8x1xf32, #tpu.memory_space<vmem>>, vector<8x1xf32>
    %4 = vector.broadcast %3 : vector<8x1xf32> to vector<8x2048xf32>
    %5 = arith.addf %2, %4 : vector<8x2048xf32>
    %cst_5 = arith.constant 0.000000e+00 : f32
    %6 = vector.broadcast %cst_5 : f32 to vector<8x2048xf32>
    %7 = arith.maximumf %5, %6 : vector<8x2048xf32>
    %8 = vector.extract_strided_slice %7 {offsets = [0, 0], sizes = [8, 128], strides = [1, 1]} : vector<8x2048xf32> to vector<8x128xf32>
    %9 = vector.extract_strided_slice %7 {offsets = [0, 128], sizes = [8, 128], strides = [1, 1]} : vector<8x2048xf32> to vector<8x128xf32>
    %10 = vector.extract_strided_slice %7 {offsets = [0, 256], sizes = [8, 128], strides = [1, 1]} : vector<8x2048xf32> to vector<8x128xf32>
    %11 = vector.extract_strided_slice %7 {offsets = [0, 384], sizes = [8, 128], strides = [1, 1]} : vector<8x2048xf32> to vector<8x128xf32>
    %12 = vector.extract_strided_slice %7 {offsets = [0, 512], sizes = [8, 128], strides = [1, 1]} : vector<8x2048xf32> to vector<8x128xf32>
    %13 = vector.extract_strided_slice %7 {offsets = [0, 640], sizes = [8, 128], strides = [1, 1]} : vector<8x2048xf32> to vector<8x128xf32>
    %14 = vector.extract_strided_slice %7 {offsets = [0, 768], sizes = [8, 128], strides = [1, 1]} : vector<8x2048xf32> to vector<8x128xf32>
    %15 = vector.extract_strided_slice %7 {offsets = [0, 896], sizes = [8, 128], strides = [1, 1]} : vector<8x2048xf32> to vector<8x128xf32>
    %16 = vector.extract_strided_slice %7 {offsets = [0, 1024], sizes = [8, 128], strides = [1, 1]} : vector<8x2048xf32> to vector<8x128xf32>
    %17 = vector.extract_strided_slice %7 {offsets = [0, 1152], sizes = [8, 128], strides = [1, 1]} : vector<8x2048xf32> to vector<8x128xf32>
    %18 = vector.extract_strided_slice %7 {offsets = [0, 1280], sizes = [8, 128], strides = [1, 1]} : vector<8x2048xf32> to vector<8x128xf32>
    %19 = vector.extract_strided_slice %7 {offsets = [0, 1408], sizes = [8, 128], strides = [1, 1]} : vector<8x2048xf32> to vector<8x128xf32>
    %20 = vector.extract_strided_slice %7 {offsets = [0, 1536], sizes = [8, 128], strides = [1, 1]} : vector<8x2048xf32> to vector<8x128xf32>
    %21 = vector.extract_strided_slice %7 {offsets = [0, 1664], sizes = [8, 128], strides = [1, 1]} : vector<8x2048xf32> to vector<8x128xf32>
    %22 = vector.extract_strided_slice %7 {offsets = [0, 1792], sizes = [8, 128], strides = [1, 1]} : vector<8x2048xf32> to vector<8x128xf32>
    %23 = vector.extract_strided_slice %7 {offsets = [0, 1920], sizes = [8, 128], strides = [1, 1]} : vector<8x2048xf32> to vector<8x128xf32>
    %24 = arith.maximumf %8, %9 : vector<8x128xf32>
    %25 = arith.maximumf %12, %13 : vector<8x128xf32>
    %26 = arith.maximumf %24, %25 : vector<8x128xf32>
    %27 = arith.maximumf %10, %11 : vector<8x128xf32>
    %28 = arith.maximumf %14, %15 : vector<8x128xf32>
    %29 = arith.maximumf %27, %28 : vector<8x128xf32>
    %30 = arith.maximumf %16, %17 : vector<8x128xf32>
    %31 = arith.maximumf %20, %21 : vector<8x128xf32>
    %32 = arith.maximumf %30, %31 : vector<8x128xf32>
    %33 = arith.maximumf %18, %19 : vector<8x128xf32>
    %34 = arith.maximumf %22, %23 : vector<8x128xf32>
    %35 = arith.maximumf %33, %34 : vector<8x128xf32>
    %c127_i32 = arith.constant 127 : i32
    %36 = tpu.dynamic_rotate %26 by %c127_i32 dim 1 : vector<8x128xf32>, i32 -> vector<8x128xf32>
    %c127_i32_6 = arith.constant 127 : i32
    %37 = tpu.dynamic_rotate %29 by %c127_i32_6 dim 1 : vector<8x128xf32>, i32 -> vector<8x128xf32>
    %c127_i32_7 = arith.constant 127 : i32
    %38 = tpu.dynamic_rotate %32 by %c127_i32_7 dim 1 : vector<8x128xf32>, i32 -> vector<8x128xf32>
    %c127_i32_8 = arith.constant 127 : i32
    %39 = tpu.dynamic_rotate %35 by %c127_i32_8 dim 1 : vector<8x128xf32>, i32 -> vector<8x128xf32>
    %c120_i32 = arith.constant 120 : i32
    %40 = tpu.dynamic_rotate %26 by %c120_i32 dim 1 : vector<8x128xf32>, i32 -> vector<8x128xf32>
    %c120_i32_9 = arith.constant 120 : i32
    %41 = tpu.dynamic_rotate %29 by %c120_i32_9 dim 1 : vector<8x128xf32>, i32 -> vector<8x128xf32>
    %c119_i32 = arith.constant 119 : i32
    %42 = tpu.dynamic_rotate %26 by %c119_i32 dim 1 : vector<8x128xf32>, i32 -> vector<8x128xf32>
    %c119_i32_10 = arith.constant 119 : i32
    %43 = tpu.dynamic_rotate %29 by %c119_i32_10 dim 1 : vector<8x128xf32>, i32 -> vector<8x128xf32>
    %c120_i32_11 = arith.constant 120 : i32
    %44 = tpu.dynamic_rotate %32 by %c120_i32_11 dim 1 : vector<8x128xf32>, i32 -> vector<8x128xf32>
    %c120_i32_12 = arith.constant 120 : i32
    %45 = tpu.dynamic_rotate %35 by %c120_i32_12 dim 1 : vector<8x128xf32>, i32 -> vector<8x128xf32>
    %c119_i32_13 = arith.constant 119 : i32
    %46 = tpu.dynamic_rotate %32 by %c119_i32_13 dim 1 : vector<8x128xf32>, i32 -> vector<8x128xf32>
    %c119_i32_14 = arith.constant 119 : i32
    %47 = tpu.dynamic_rotate %35 by %c119_i32_14 dim 1 : vector<8x128xf32>, i32 -> vector<8x128xf32>
    %48 = tpu.concatenate %26, %29, %36, %37, %32, %35, %38, %39, %40, %41, %42, %43, %44, %45, %46, %47 in 0 : vector<8x128xf32>, vector<8x128xf32>, vector<8x128xf32>, vector<8x128xf32>, vector<8x128xf32>, vector<8x128xf32>, vector<8x128xf32>, vector<8x128xf32>, vector<8x128xf32>, vector<8x128xf32>, vector<8x128xf32>, vector<8x128xf32>, vector<8x128xf32>, vector<8x128xf32>, vector<8x128xf32>, vector<8x128xf32> -> vector<128x128xf32>
    %c126_i32 = arith.constant 126 : i32
    %49 = tpu.dynamic_rotate %26 by %c126_i32 dim 1 : vector<8x128xf32>, i32 -> vector<8x128xf32>
    %c126_i32_15 = arith.constant 126 : i32
    %50 = tpu.dynamic_rotate %32 by %c126_i32_15 dim 1 : vector<8x128xf32>, i32 -> vector<8x128xf32>
    %c118_i32 = arith.constant 118 : i32
    %51 = tpu.dynamic_rotate %26 by %c118_i32 dim 1 : vector<8x128xf32>, i32 -> vector<8x128xf32>
    %c118_i32_16 = arith.constant 118 : i32
    %52 = tpu.dynamic_rotate %32 by %c118_i32_16 dim 1 : vector<8x128xf32>, i32 -> vector<8x128xf32>
    %53 = tpu.concatenate %29, %36, %37, %49, %35, %38, %39, %50, %41, %42, %43, %51, %45, %46, %47, %52 in 0 : vector<8x128xf32>, vector<8x128xf32>, vector<8x128xf32>, vector<8x128xf32>, vector<8x128xf32>, vector<8x128xf32>, vector<8x128xf32>, vector<8x128xf32>, vector<8x128xf32>, vector<8x128xf32>, vector<8x128xf32>, vector<8x128xf32>, vector<8x128xf32>, vector<8x128xf32>, vector<8x128xf32>, vector<8x128xf32> -> vector<128x128xf32>
    %c112_i32 = arith.constant 112 : i32
    %54 = tpu.dynamic_rotate %26 by %c112_i32 dim 1 : vector<8x128xf32>, i32 -> vector<8x128xf32>
    %c112_i32_17 = arith.constant 112 : i32
    %55 = tpu.dynamic_rotate %29 by %c112_i32_17 dim 1 : vector<8x128xf32>, i32 -> vector<8x128xf32>
    %c111_i32 = arith.constant 111 : i32
    %56 = tpu.dynamic_rotate %26 by %c111_i32 dim 1 : vector<8x128xf32>, i32 -> vector<8x128xf32>
    %c111_i32_18 = arith.constant 111 : i32
    %57 = tpu.dynamic_rotate %29 by %c111_i32_18 dim 1 : vector<8x128xf32>, i32 -> vector<8x128xf32>
    %58 = tpu.concatenate %32, %35, %38, %39, %40, %41, %42, %43, %44, %45, %46, %47, %54, %55, %56, %57 in 0 : vector<8x128xf32>, vector<8x128xf32>, vector<8x128xf32>, vector<8x128xf32>, vector<8x128xf32>, vector<8x128xf32>, vector<8x128xf32>, vector<8x128xf32>, vector<8x128xf32>, vector<8x128xf32>, vector<8x128xf32>, vector<8x128xf32>, vector<8x128xf32>, vector<8x128xf32>, vector<8x128xf32>, vector<8x128xf32> -> vector<128x128xf32>
    %c110_i32 = arith.constant 110 : i32
    %59 = tpu.dynamic_rotate %26 by %c110_i32 dim 1 : vector<8x128xf32>, i32 -> vector<8x128xf32>
    %60 = tpu.concatenate %35, %38, %39, %50, %41, %42, %43, %51, %45, %46, %47, %52, %55, %56, %57, %59 in 0 : vector<8x128xf32>, vector<8x128xf32>, vector<8x128xf32>, vector<8x128xf32>, vector<8x128xf32>, vector<8x128xf32>, vector<8x128xf32>, vector<8x128xf32>, vector<8x128xf32>, vector<8x128xf32>, vector<8x128xf32>, vector<8x128xf32>, vector<8x128xf32>, vector<8x128xf32>, vector<8x128xf32>, vector<8x128xf32> -> vector<128x128xf32>
    %61 = tpu.concatenate %48, %53, %58, %60 in 1 : vector<128x128xf32>, vector<128x128xf32>, vector<128x128xf32>, vector<128x128xf32> -> vector<128x512xf32>
    %c0_19 = arith.constant 0 : index
    %c0_20 = arith.constant 0 : index
    %62 = vector.load %arg3[%c0_19, %c0_20] : memref<12x128xf32, #tpu.memory_space<vmem>>, vector<12x128xf32>
    %cst_21 = arith.constant dense<0.000000e+00> : vector<12x512xf32>
    %63 = tpu.matmul %62, %61, %cst_21 {dimension_numbers = #tpu.dot_dimension_numbers<[1], [0], [0], [1], [0, 0, 1, 1], [], []>} : vector<12x128xf32>, vector<128x512xf32>, vector<12x512xf32> -> vector<12x512xf32>
    %64 = vector.extract_strided_slice %63 {offsets = [0, 0], sizes = [12, 128], strides = [1, 1]} : vector<12x512xf32> to vector<12x128xf32>
    %65 = vector.extract_strided_slice %63 {offsets = [0, 128], sizes = [12, 128], strides = [1, 1]} : vector<12x512xf32> to vector<12x128xf32>
    %66 = vector.extract_strided_slice %63 {offsets = [0, 256], sizes = [12, 128], strides = [1, 1]} : vector<12x512xf32> to vector<12x128xf32>
    %67 = vector.extract_strided_slice %63 {offsets = [0, 384], sizes = [12, 128], strides = [1, 1]} : vector<12x512xf32> to vector<12x128xf32>
    %68 = arith.maximumf %64, %65 : vector<12x128xf32>
    %69 = arith.maximumf %66, %67 : vector<12x128xf32>
    %70 = arith.maximumf %68, %69 : vector<12x128xf32>
    %c0_22 = arith.constant 0 : index
    %c0_23 = arith.constant 0 : index
    %71 = vector.load %arg4[%c0_22, %c0_23] : memref<12x1xf32, #tpu.memory_space<vmem>>, vector<12x1xf32>
    %72 = vector.broadcast %71 : vector<12x1xf32> to vector<12x128xf32>
    %73 = arith.addf %70, %72 : vector<12x128xf32>
    %cst_24 = arith.constant 0.000000e+00 : f32
    %74 = vector.broadcast %cst_24 : f32 to vector<12x128xf32>
    %75 = arith.maximumf %73, %74 : vector<12x128xf32>
    %76 = vector.extract_strided_slice %75 {offsets = [0, 0], sizes = [12, 64], strides = [1, 1]} : vector<12x128xf32> to vector<12x64xf32>
    %77 = vector.extract_strided_slice %75 {offsets = [0, 64], sizes = [12, 64], strides = [1, 1]} : vector<12x128xf32> to vector<12x64xf32>
    %78 = vector.extract_strided_slice %76 {offsets = [0, 0], sizes = [1, 64], strides = [1, 1]} : vector<12x64xf32> to vector<1x64xf32>
    %79 = vector.extract_strided_slice %77 {offsets = [0, 0], sizes = [1, 64], strides = [1, 1]} : vector<12x64xf32> to vector<1x64xf32>
    %80 = tpu.concatenate %78, %79 in 0 : vector<1x64xf32>, vector<1x64xf32> -> vector<2x64xf32>
    %81 = vector.extract_strided_slice %76 {offsets = [1, 0], sizes = [1, 64], strides = [1, 1]} : vector<12x64xf32> to vector<1x64xf32>
    %82 = vector.extract_strided_slice %77 {offsets = [1, 0], sizes = [1, 64], strides = [1, 1]} : vector<12x64xf32> to vector<1x64xf32>
    %83 = tpu.concatenate %81, %82 in 0 : vector<1x64xf32>, vector<1x64xf32> -> vector<2x64xf32>
    %84 = vector.extract_strided_slice %76 {offsets = [2, 0], sizes = [1, 64], strides = [1, 1]} : vector<12x64xf32> to vector<1x64xf32>
    %85 = vector.extract_strided_slice %77 {offsets = [2, 0], sizes = [1, 64], strides = [1, 1]} : vector<12x64xf32> to vector<1x64xf32>
    %86 = tpu.concatenate %84, %85 in 0 : vector<1x64xf32>, vector<1x64xf32> -> vector<2x64xf32>
    %87 = vector.extract_strided_slice %76 {offsets = [3, 0], sizes = [1, 64], strides = [1, 1]} : vector<12x64xf32> to vector<1x64xf32>
    %88 = vector.extract_strided_slice %77 {offsets = [3, 0], sizes = [1, 64], strides = [1, 1]} : vector<12x64xf32> to vector<1x64xf32>
    %89 = tpu.concatenate %87, %88 in 0 : vector<1x64xf32>, vector<1x64xf32> -> vector<2x64xf32>
    %90 = vector.extract_strided_slice %76 {offsets = [4, 0], sizes = [1, 64], strides = [1, 1]} : vector<12x64xf32> to vector<1x64xf32>
    %91 = vector.extract_strided_slice %77 {offsets = [4, 0], sizes = [1, 64], strides = [1, 1]} : vector<12x64xf32> to vector<1x64xf32>
    %92 = tpu.concatenate %90, %91 in 0 : vector<1x64xf32>, vector<1x64xf32> -> vector<2x64xf32>
    %93 = vector.extract_strided_slice %76 {offsets = [5, 0], sizes = [1, 64], strides = [1, 1]} : vector<12x64xf32> to vector<1x64xf32>
    %94 = vector.extract_strided_slice %77 {offsets = [5, 0], sizes = [1, 64], strides = [1, 1]} : vector<12x64xf32> to vector<1x64xf32>
    %95 = tpu.concatenate %93, %94 in 0 : vector<1x64xf32>, vector<1x64xf32> -> vector<2x64xf32>
    %96 = vector.extract_strided_slice %76 {offsets = [6, 0], sizes = [1, 64], strides = [1, 1]} : vector<12x64xf32> to vector<1x64xf32>
    %97 = vector.extract_strided_slice %77 {offsets = [6, 0], sizes = [1, 64], strides = [1, 1]} : vector<12x64xf32> to vector<1x64xf32>
    %98 = tpu.concatenate %96, %97 in 0 : vector<1x64xf32>, vector<1x64xf32> -> vector<2x64xf32>
    %99 = vector.extract_strided_slice %76 {offsets = [7, 0], sizes = [1, 64], strides = [1, 1]} : vector<12x64xf32> to vector<1x64xf32>
    %100 = vector.extract_strided_slice %77 {offsets = [7, 0], sizes = [1, 64], strides = [1, 1]} : vector<12x64xf32> to vector<1x64xf32>
    %101 = tpu.concatenate %99, %100 in 0 : vector<1x64xf32>, vector<1x64xf32> -> vector<2x64xf32>
    %102 = vector.extract_strided_slice %76 {offsets = [8, 0], sizes = [1, 64], strides = [1, 1]} : vector<12x64xf32> to vector<1x64xf32>
    %103 = vector.extract_strided_slice %77 {offsets = [8, 0], sizes = [1, 64], strides = [1, 1]} : vector<12x64xf32> to vector<1x64xf32>
    %104 = tpu.concatenate %102, %103 in 0 : vector<1x64xf32>, vector<1x64xf32> -> vector<2x64xf32>
    %105 = vector.extract_strided_slice %76 {offsets = [9, 0], sizes = [1, 64], strides = [1, 1]} : vector<12x64xf32> to vector<1x64xf32>
    %106 = vector.extract_strided_slice %77 {offsets = [9, 0], sizes = [1, 64], strides = [1, 1]} : vector<12x64xf32> to vector<1x64xf32>
    %107 = tpu.concatenate %105, %106 in 0 : vector<1x64xf32>, vector<1x64xf32> -> vector<2x64xf32>
    %108 = vector.extract_strided_slice %76 {offsets = [10, 0], sizes = [1, 64], strides = [1, 1]} : vector<12x64xf32> to vector<1x64xf32>
    %109 = vector.extract_strided_slice %77 {offsets = [10, 0], sizes = [1, 64], strides = [1, 1]} : vector<12x64xf32> to vector<1x64xf32>
    %110 = tpu.concatenate %108, %109 in 0 : vector<1x64xf32>, vector<1x64xf32> -> vector<2x64xf32>
    %111 = vector.extract_strided_slice %76 {offsets = [11, 0], sizes = [1, 64], strides = [1, 1]} : vector<12x64xf32> to vector<1x64xf32>
    %112 = vector.extract_strided_slice %77 {offsets = [11, 0], sizes = [1, 64], strides = [1, 1]} : vector<12x64xf32> to vector<1x64xf32>
    %113 = tpu.concatenate %111, %112 in 0 : vector<1x64xf32>, vector<1x64xf32> -> vector<2x64xf32>
    %114 = tpu.concatenate %80, %83, %86, %89, %92, %95, %98, %101, %104, %107, %110, %113 in 1 : vector<2x64xf32>, vector<2x64xf32>, vector<2x64xf32>, vector<2x64xf32>, vector<2x64xf32>, vector<2x64xf32>, vector<2x64xf32>, vector<2x64xf32>, vector<2x64xf32>, vector<2x64xf32>, vector<2x64xf32>, vector<2x64xf32> -> vector<2x768xf32>
    %c0_25 = arith.constant 0 : index
    %c0_26 = arith.constant 0 : index
    %115 = vector.load %arg5[%c0_25, %c0_26] : memref<768x216xf32, #tpu.memory_space<vmem>>, vector<768x216xf32>
    %cst_27 = arith.constant dense<0.000000e+00> : vector<2x216xf32>
    %116 = tpu.matmul %114, %115, %cst_27 {dimension_numbers = #tpu.dot_dimension_numbers<[1], [0], [0], [1], [0, 0, 1, 1], [], []>} : vector<2x768xf32>, vector<768x216xf32>, vector<2x216xf32> -> vector<2x216xf32>
    %c0_28 = arith.constant 0 : index
    %c0_29 = arith.constant 0 : index
    %117 = vector.load %arg6[%c0_28, %c0_29] : memref<1x216xf32, #tpu.memory_space<vmem>>, vector<1x216xf32>
    %118 = vector.broadcast %117 : vector<1x216xf32> to vector<2x216xf32>
    %119 = arith.addf %116, %118 : vector<2x216xf32>
    %cst_30 = arith.constant 0.000000e+00 : f32
    %120 = vector.broadcast %cst_30 : f32 to vector<2x216xf32>
    %121 = arith.maximumf %119, %120 : vector<2x216xf32>
    %c0_31 = arith.constant 0 : index
    %c0_32 = arith.constant 0 : index
    %122 = vector.load %arg7[%c0_31, %c0_32] : memref<216x1xf32, #tpu.memory_space<vmem>>, vector<216x1xf32>
    %cst_33 = arith.constant dense<0.000000e+00> : vector<2x1xf32>
    %123 = tpu.matmul %121, %122, %cst_33 {dimension_numbers = #tpu.dot_dimension_numbers<[1], [0], [0], [1], [0, 0, 1, 1], [], []>} : vector<2x216xf32>, vector<216x1xf32>, vector<2x1xf32> -> vector<2x1xf32>
    %c0_34 = arith.constant 0 : index
    %c0_35 = arith.constant 0 : index
    %124 = vector.load %arg8[%c0_34, %c0_35] : memref<1x1xf32, #tpu.memory_space<vmem>>, vector<1x1xf32>
    %125 = vector.broadcast %124 : vector<1x1xf32> to vector<2x1xf32>
    %126 = arith.addf %123, %125 : vector<2x1xf32>
    %c0_36 = arith.constant 0 : index
    %c0_37 = arith.constant 0 : index
    %127 = vector.load %arg9[%c0_36, %c0_37] : memref<2x1xf32, #tpu.memory_space<vmem>>, vector<2x1xf32>
    tpu.vector_store %arg9[%c0_36, %c0_37], %126 {strides = array<i32>} : memref<2x1xf32, #tpu.memory_space<vmem>>, vector<2x1xf32>,
    return
  }
}

</mosaic_0001>

<llo_original>
// kernel: cnn_forward.1
$region0: #{cnn_forward.1}
  #allocation0 [shape = 'u32[]', space=smem, size = 0x4, offset = 0x4, fixed_abs, tag = 'smem constant byte address 0x4 - core index']
  #allocation1 [shape = 'u32[72,128]{1,0:T(1,128)}', space=vmem, size = 0x9000, scoped, tag = 'internal scratch']
  #allocation2 [shape = 'f32[1,1]{1,0:T(1,128)S(1)}', space=vmem, size = 0x200, scoped, tag = 'scoped memory for cnn_forward.1']
  %s0 = inlined_call_operand.vmem [shape: f32[49,2048], index: 0, kind: input, shape index: {}]
  %s1 = inlined_call_operand.vmem [shape: f32[8,49], index: 1, kind: input, shape index: {}]
  %s2 = inlined_call_operand.vmem [shape: f32[8,1], index: 2, kind: input, shape index: {}]
  %s3 = inlined_call_operand.vmem [shape: f32[12,128], index: 3, kind: input, shape index: {}]
  %s4 = inlined_call_operand.vmem [shape: f32[12,1], index: 4, kind: input, shape index: {}]
  %s5 = inlined_call_operand.vmem [shape: f32[768,216], index: 5, kind: input, shape index: {}]
  %s6 = inlined_call_operand.vmem [shape: f32[1,216], index: 6, kind: input, shape index: {}]
  %s7 = inlined_call_operand.vmem [shape: f32[216,1], index: 7, kind: input, shape index: {}]
  %s8 = inlined_call_operand.<no memory space> [shape: f32[1,1], index: 8, kind: input, shape index: {}]
  %s9 = inlined_call_operand.vmem [shape: f32[2,1], index: 9, kind: output, shape index: {}]
  %s10 = sld [smem:[#allocation0]]
  $region46: #{cnn_forward.1} parent=0
    _
  %s12 = ssub.s32 1, %s10
  %s13 = scalar_select 0, %s12, %s10
  %v14 = vstv %s8
  %15 = vst [vmem:[#allocation2] sm:$0x1] %v14
  // Predicated region
  $region2: #{cnn_forward.1} parent=0 // pred_check
    _
  $region3: #{cnn_forward.1} parent=0 // pred_check_branch
    %17 = sbr.rel (0) target = $region5
  $region4: #{cnn_forward.1} parent=0 // pred_region
    _
  $region5: #{cnn_forward.1} parent=0 // pred_fallthru
    _
  // Predicated region
  $region6: #{cnn_forward.1} parent=0 // pred_check
    _
  $region7: #{cnn_forward.1} parent=0 // pred_check_branch
    %19 = sbr.rel (0) target = $region9
  $region8: #{cnn_forward.1} parent=0 // pred_region
    _
  $region9: #{cnn_forward.1} parent=0 // pred_fallthru
    _
  // Predicated region
  $region10: #{cnn_forward.1} parent=0 // pred_check
    _
  $region11: #{cnn_forward.1} parent=0 // pred_check_branch
    %21 = sbr.rel (0) target = $region13
  $region12: #{cnn_forward.1} parent=0 // pred_region
    _
  $region13: #{cnn_forward.1} parent=0 // pred_fallthru
    _
  // Predicated region
  $region14: #{cnn_forward.1} parent=0 // pred_check
    _
  $region15: #{cnn_forward.1} parent=0 // pred_check_branch
    %23 = sbr.rel (0) target = $region17
  $region16: #{cnn_forward.1} parent=0 // pred_region
    _
  $region17: #{cnn_forward.1} parent=0 // pred_fallthru
    _
  // Predicated region
  $region18: #{cnn_forward.1} parent=0 // pred_check
    _
  $region19: #{cnn_forward.1} parent=0 // pred_check_branch
    %25 = sbr.rel (0) target = $region21
  $region20: #{cnn_forward.1} parent=0 // pred_region
    _
  $region21: #{cnn_forward.1} parent=0 // pred_fallthru
    _
  // Predicated region
  $region22: #{cnn_forward.1} parent=0 // pred_check
    _
  $region23: #{cnn_forward.1} parent=0 // pred_check_branch
    %27 = sbr.rel (0) target = $region25
  $region24: #{cnn_forward.1} parent=0 // pred_region
    _
  $region25: #{cnn_forward.1} parent=0 // pred_fallthru
    _
  // Predicated region
  $region26: #{cnn_forward.1} parent=0 // pred_check
    _
  $region27: #{cnn_forward.1} parent=0 // pred_check_branch
    %29 = sbr.rel (0) target = $region29
  $region28: #{cnn_forward.1} parent=0 // pred_region
    _
  $region29: #{cnn_forward.1} parent=0 // pred_fallthru
    _
  // Predicated region
  $region30: #{cnn_forward.1} parent=0 // pred_check
    _
  $region31: #{cnn_forward.1} parent=0 // pred_check_branch
    %31 = sbr.rel (0) target = $region33
  $region32: #{cnn_forward.1} parent=0 // pred_region
    _
  $region33: #{cnn_forward.1} parent=0 // pred_fallthru
    _
  // Predicated region
  $region34: #{cnn_forward.1} parent=0 // pred_check
    _
  $region35: #{cnn_forward.1} parent=0 // pred_check_branch
    %33 = sbr.rel (0) target = $region37
  $region36: #{cnn_forward.1} parent=0 // pred_region
    _
  $region37: #{cnn_forward.1} parent=0 // pred_fallthru
    _
  %v34 = vld [vmem:[%s1] sm:$0xff]
  %v35 = vld [vmem:[%s0] sm:$0xff]
  %v36 = vld [vmem:[%s0 + $0x8] sm:$0xff]
  %v37 = vld [vmem:[%s0 + $0x10] sm:$0xff]
  %v38 = vld [vmem:[%s0 + $0x18] sm:$0xff]
  %v39 = vld [vmem:[%s0 + $0x20] sm:$0xff]
  %v40 = vld [vmem:[%s0 + $0x28] sm:$0xff]
  %v41 = vld [vmem:[%s0 + $0x30] sm:$0xff]
  %v42 = vld [vmem:[%s0 + $0x38] sm:$0xff]
  %v43 = vld [vmem:[%s0 + $0x40] sm:$0xff]
  %v44 = vld [vmem:[%s0 + $0x48] sm:$0xff]
  %v45 = vld [vmem:[%s0 + $0x50] sm:$0xff]
  %v46 = vld [vmem:[%s0 + $0x58] sm:$0xff]
  %v47 = vld [vmem:[%s0 + $0x60] sm:$0xff]
  %v48 = vld [vmem:[%s0 + $0x68] sm:$0xff]
  %v49 = vld [vmem:[%s0 + $0x70] sm:$0xff]
  %v50 = vld [vmem:[%s0 + $0x78] sm:$0xff]
  %v51 = vld [vmem:[%s0 + $0x80] sm:$0xff]
  %v52 = vld [vmem:[%s0 + $0x88] sm:$0xff]
  %v53 = vld [vmem:[%s0 + $0x90] sm:$0xff]
  %v54 = vld [vmem:[%s0 + $0x98] sm:$0xff]
  %v55 = vld [vmem:[%s0 + $0xa0] sm:$0xff]
  %v56 = vld [vmem:[%s0 + $0xa8] sm:$0xff]
  %v57 = vld [vmem:[%s0 + $0xb0] sm:$0xff]
  %v58 = vld [vmem:[%s0 + $0xb8] sm:$0xff]
  %v59 = vld [vmem:[%s0 + $0xc0] sm:$0xff]
  %v60 = vld [vmem:[%s0 + $0xc8] sm:$0xff]
  %v61 = vld [vmem:[%s0 + $0xd0] sm:$0xff]
  %v62 = vld [vmem:[%s0 + $0xd8] sm:$0xff]
  %v63 = vld [vmem:[%s0 + $0xe0] sm:$0xff]
  %v64 = vld [vmem:[%s0 + $0xe8] sm:$0xff]
  %v65 = vld [vmem:[%s0 + $0xf0] sm:$0xff]
  %v66 = vld [vmem:[%s0 + $0xf8] sm:$0xff]
  %v67 = vld [vmem:[%s0 + $0x100] sm:$0xff]
  %v68 = vld [vmem:[%s0 + $0x108] sm:$0xff]
  %v69 = vld [vmem:[%s0 + $0x110] sm:$0xff]
  %v70 = vld [vmem:[%s0 + $0x118] sm:$0xff]
  %v71 = vld [vmem:[%s0 + $0x120] sm:$0xff]
  %v72 = vld [vmem:[%s0 + $0x128] sm:$0xff]
  %v73 = vld [vmem:[%s0 + $0x130] sm:$0xff]
  %v74 = vld [vmem:[%s0 + $0x138] sm:$0xff]
  %v75 = vld [vmem:[%s0 + $0x140] sm:$0xff]
  %v76 = vld [vmem:[%s0 + $0x148] sm:$0xff]
  %v77 = vld [vmem:[%s0 + $0x150] sm:$0xff]
  %v78 = vld [vmem:[%s0 + $0x158] sm:$0xff]
  %v79 = vld [vmem:[%s0 + $0x160] sm:$0xff]
  %v80 = vld [vmem:[%s0 + $0x168] sm:$0xff]
  %v81 = vld [vmem:[%s0 + $0x170] sm:$0xff]
  %v82 = vld [vmem:[%s0 + $0x178] sm:$0xff]
  %v83 = vld [vmem:[%s0 + $0x180] sm:$0xff]
  %v84 = vld [vmem:[%s0 + $0x188] sm:$0xff]
  %v85 = vld [vmem:[%s0 + $0x190] sm:$0xff]
  %v86 = vld [vmem:[%s0 + $0x198] sm:$0xff]
  %v87 = vld [vmem:[%s0 + $0x1a0] sm:$0xff]
  %v88 = vld [vmem:[%s0 + $0x1a8] sm:$0xff]
  %v89 = vld [vmem:[%s0 + $0x1b0] sm:$0xff]
  %v90 = vld [vmem:[%s0 + $0x1b8] sm:$0xff]
  %v91 = vld [vmem:[%s0 + $0x1c0] sm:$0xff]
  %v92 = vld [vmem:[%s0 + $0x1c8] sm:$0xff]
  %v93 = vld [vmem:[%s0 + $0x1d0] sm:$0xff]
  %v94 = vld [vmem:[%s0 + $0x1d8] sm:$0xff]
  %v95 = vld [vmem:[%s0 + $0x1e0] sm:$0xff]
  %v96 = vld [vmem:[%s0 + $0x1e8] sm:$0xff]
  %v97 = vld [vmem:[%s0 + $0x1f0] sm:$0xff]
  %v98 = vld [vmem:[%s0 + $0x1f8] sm:$0xff]
  %v99 = vld [vmem:[%s0 + $0x200] sm:$0xff]
  %v100 = vld [vmem:[%s0 + $0x208] sm:$0xff]
  %v101 = vld [vmem:[%s0 + $0x210] sm:$0xff]
  %v102 = vld [vmem:[%s0 + $0x218] sm:$0xff]
  %v103 = vld [vmem:[%s0 + $0x220] sm:$0xff]
  %v104 = vld [vmem:[%s0 + $0x228] sm:$0xff]
  %v105 = vld [vmem:[%s0 + $0x230] sm:$0xff]
  %v106 = vld [vmem:[%s0 + $0x238] sm:$0xff]
  %v107 = vld [vmem:[%s0 + $0x240] sm:$0xff]
  %v108 = vld [vmem:[%s0 + $0x248] sm:$0xff]
  %v109 = vld [vmem:[%s0 + $0x250] sm:$0xff]
  %v110 = vld [vmem:[%s0 + $0x258] sm:$0xff]
  %v111 = vld [vmem:[%s0 + $0x260] sm:$0xff]
  %v112 = vld [vmem:[%s0 + $0x268] sm:$0xff]
  %v113 = vld [vmem:[%s0 + $0x270] sm:$0xff]
  %v114 = vld [vmem:[%s0 + $0x278] sm:$0xff]
  %v115 = vld [vmem:[%s0 + $0x280] sm:$0xff]
  %v116 = vld [vmem:[%s0 + $0x288] sm:$0xff]
  %v117 = vld [vmem:[%s0 + $0x290] sm:$0xff]
  %v118 = vld [vmem:[%s0 + $0x298] sm:$0xff]
  %v119 = vld [vmem:[%s0 + $0x2a0] sm:$0xff]
  %v120 = vld [vmem:[%s0 + $0x2a8] sm:$0xff]
  %v121 = vld [vmem:[%s0 + $0x2b0] sm:$0xff]
  %v122 = vld [vmem:[%s0 + $0x2b8] sm:$0xff]
  %v123 = vld [vmem:[%s0 + $0x2c0] sm:$0xff]
  %v124 = vld [vmem:[%s0 + $0x2c8] sm:$0xff]
  %v125 = vld [vmem:[%s0 + $0x2d0] sm:$0xff]
  %v126 = vld [vmem:[%s0 + $0x2d8] sm:$0xff]
  %v127 = vld [vmem:[%s0 + $0x2e0] sm:$0xff]
  %v128 = vld [vmem:[%s0 + $0x2e8] sm:$0xff]
  %v129 = vld [vmem:[%s0 + $0x2f0] sm:$0xff]
  %v130 = vld [vmem:[%s0 + $0x2f8] sm:$0xff]
  %v131 = vld [vmem:[%s0 + $0x300] sm:$0x1]
  %v132 = vld [vmem:[%s0 + $0x308] sm:$0x1]
  %v133 = vld [vmem:[%s0 + $0x310] sm:$0x1]
  %v134 = vld [vmem:[%s0 + $0x318] sm:$0x1]
  %v135 = vld [vmem:[%s0 + $0x320] sm:$0x1]
  %v136 = vld [vmem:[%s0 + $0x328] sm:$0x1]
  %v137 = vld [vmem:[%s0 + $0x330] sm:$0x1]
  %v138 = vld [vmem:[%s0 + $0x338] sm:$0x1]
  %v139 = vld [vmem:[%s0 + $0x340] sm:$0x1]
  %v140 = vld [vmem:[%s0 + $0x348] sm:$0x1]
  %v141 = vld [vmem:[%s0 + $0x350] sm:$0x1]
  %v142 = vld [vmem:[%s0 + $0x358] sm:$0x1]
  %v143 = vld [vmem:[%s0 + $0x360] sm:$0x1]
  %v144 = vld [vmem:[%s0 + $0x368] sm:$0x1]
  %v145 = vld [vmem:[%s0 + $0x370] sm:$0x1]
  %v146 = vld [vmem:[%s0 + $0x378] sm:$0x1]
  %v147 = vld [vmem:[%s2] sm:$0xff]
  %149 = vset.pattern.permute.xlu0 0
  %150 = vperm.xlu0 %149, %v147
  %v151 = vpop.permute.xlu0 %150
  %vm153 = vcmask 400384
  %v155 = vsel %vm153, %v34, 0
  %vm157 = vcmask 1040384
  %v159 = vsel %vm157, %v131, 0
  %v162 = vsel %vm157, %v132, 0
  %v165 = vsel %vm157, %v133, 0
  %v168 = vsel %vm157, %v134, 0
  %v171 = vsel %vm157, %v135, 0
  %v174 = vsel %vm157, %v136, 0
  %v177 = vsel %vm157, %v137, 0
  %v180 = vsel %vm157, %v138, 0
  %v183 = vsel %vm157, %v139, 0
  %v186 = vsel %vm157, %v140, 0
  %v189 = vsel %vm157, %v141, 0
  %v192 = vsel %vm157, %v142, 0
  %v195 = vsel %vm157, %v143, 0
  %v198 = vsel %vm157, %v144, 0
  %v201 = vsel %vm157, %v145, 0
  %v204 = vsel %vm157, %v146, 0
  %206 = vmatpush.msra.mxu0 0.0
  %207 = vmatpush.msra.mxu0 0.0
  %208 = vmatpush.msra.mxu0 0.0
  %209 = vmatpush.msra.mxu0 0.0
  %210 = vmatpush.msra.mxu0 0.0
  %211 = vmatpush.msra.mxu0 0.0
  %212 = vmatpush.msra.mxu0 0.0
  %213 = vmatpush.msra.mxu0 0.0
  %214 = vmatpush.msra.mxu0 0.0
  %215 = vmatpush.msra.mxu0 %v159
  %216 = vmatpush.msra.mxu0 %v115
  %217 = vmatpush.msra.mxu0 %v99
  %218 = vmatpush.msra.mxu0 %v83
  %219 = vmatpush.msra.mxu0 %v67
  %220 = vmatpush.msra.mxu0 %v51
  %221 = vmatpush.msra.mxu0 %v35
  %222 = vmatmul.f32.gmra.mxu0 %v155
  %v223 = vpop.f32.mrf.mxu0
  %v224 = vadd.f32 %v151, %v223
  %225 = vdwg.mxu0
  %226 = vmatpush.msra.mxu0 0.0
  %227 = vmatpush.msra.mxu0 0.0
  %228 = vmatpush.msra.mxu0 0.0
  %229 = vmatpush.msra.mxu0 0.0
  %230 = vmatpush.msra.mxu0 0.0
  %231 = vmatpush.msra.mxu0 0.0
  %232 = vmatpush.msra.mxu0 0.0
  %233 = vmatpush.msra.mxu0 0.0
  %234 = vmatpush.msra.mxu0 0.0
  %235 = vmatpush.msra.mxu0 %v162
  %236 = vmatpush.msra.mxu0 %v116
  %237 = vmatpush.msra.mxu0 %v100
  %238 = vmatpush.msra.mxu0 %v84
  %239 = vmatpush.msra.mxu0 %v68
  %240 = vmatpush.msra.mxu0 %v52
  %241 = vmatpush.msra.mxu0 %v36
  %242 = vmatmul.f32.gmra.mxu0 %v155
  %v243 = vpop.f32.mrf.mxu0
  %v244 = vadd.f32 %v151, %v243
  %245 = vdwg.mxu0
  %246 = vmatpush.msra.mxu0 0.0
  %247 = vmatpush.msra.mxu0 0.0
  %248 = vmatpush.msra.mxu0 0.0
  %249 = vmatpush.msra.mxu0 0.0
  %250 = vmatpush.msra.mxu0 0.0
  %251 = vmatpush.msra.mxu0 0.0
  %252 = vmatpush.msra.mxu0 0.0
  %253 = vmatpush.msra.mxu0 0.0
  %254 = vmatpush.msra.mxu0 0.0
  %255 = vmatpush.msra.mxu0 %v165
  %256 = vmatpush.msra.mxu0 %v117
  %257 = vmatpush.msra.mxu0 %v101
  %258 = vmatpush.msra.mxu0 %v85
  %259 = vmatpush.msra.mxu0 %v69
  %260 = vmatpush.msra.mxu0 %v53
  %261 = vmatpush.msra.mxu0 %v37
  %262 = vmatmul.f32.gmra.mxu0 %v155
  %v263 = vpop.f32.mrf.mxu0
  %v264 = vadd.f32 %v151, %v263
  %265 = vdwg.mxu0
  %266 = vmatpush.msra.mxu0 0.0
  %267 = vmatpush.msra.mxu0 0.0
  %268 = vmatpush.msra.mxu0 0.0
  %269 = vmatpush.msra.mxu0 0.0
  %270 = vmatpush.msra.mxu0 0.0
  %271 = vmatpush.msra.mxu0 0.0
  %272 = vmatpush.msra.mxu0 0.0
  %273 = vmatpush.msra.mxu0 0.0
  %274 = vmatpush.msra.mxu0 0.0
  %275 = vmatpush.msra.mxu0 %v168
  %276 = vmatpush.msra.mxu0 %v118
  %277 = vmatpush.msra.mxu0 %v102
  %278 = vmatpush.msra.mxu0 %v86
  %279 = vmatpush.msra.mxu0 %v70
  %280 = vmatpush.msra.mxu0 %v54
  %281 = vmatpush.msra.mxu0 %v38
  %282 = vmatmul.f32.gmra.mxu0 %v155
  %v283 = vpop.f32.mrf.mxu0
  %v284 = vadd.f32 %v151, %v283
  %285 = vdwg.mxu0
  %286 = vmatpush.msra.mxu0 0.0
  %287 = vmatpush.msra.mxu0 0.0
  %288 = vmatpush.msra.mxu0 0.0
  %289 = vmatpush.msra.mxu0 0.0
  %290 = vmatpush.msra.mxu0 0.0
  %291 = vmatpush.msra.mxu0 0.0
  %292 = vmatpush.msra.mxu0 0.0
  %293 = vmatpush.msra.mxu0 0.0
  %294 = vmatpush.msra.mxu0 0.0
  %295 = vmatpush.msra.mxu0 %v171
  %296 = vmatpush.msra.mxu0 %v119
  %297 = vmatpush.msra.mxu0 %v103
  %298 = vmatpush.msra.mxu0 %v87
  %299 = vmatpush.msra.mxu0 %v71
  %300 = vmatpush.msra.mxu0 %v55
  %301 = vmatpush.msra.mxu0 %v39
  %302 = vmatmul.f32.gmra.mxu0 %v155
  %v303 = vpop.f32.mrf.mxu0
  %v304 = vadd.f32 %v151, %v303
  %305 = vdwg.mxu0
  %306 = vmatpush.msra.mxu0 0.0
  %307 = vmatpush.msra.mxu0 0.0
  %308 = vmatpush.msra.mxu0 0.0
  %309 = vmatpush.msra.mxu0 0.0
  %310 = vmatpush.msra.mxu0 0.0
  %311 = vmatpush.msra.mxu0 0.0
  %312 = vmatpush.msra.mxu0 0.0
  %313 = vmatpush.msra.mxu0 0.0
  %314 = vmatpush.msra.mxu0 0.0
  %315 = vmatpush.msra.mxu0 %v174
  %316 = vmatpush.msra.mxu0 %v120
  %317 = vmatpush.msra.mxu0 %v104
  %318 = vmatpush.msra.mxu0 %v88
  %319 = vmatpush.msra.mxu0 %v72
  %320 = vmatpush.msra.mxu0 %v56
  %321 = vmatpush.msra.mxu0 %v40
  %322 = vmatmul.f32.gmra.mxu0 %v155
  %v323 = vpop.f32.mrf.mxu0
  %v324 = vadd.f32 %v151, %v323
  %325 = vdwg.mxu0
  %326 = vmatpush.msra.mxu0 0.0
  %327 = vmatpush.msra.mxu0 0.0
  %328 = vmatpush.msra.mxu0 0.0
  %329 = vmatpush.msra.mxu0 0.0
  %330 = vmatpush.msra.mxu0 0.0
  %331 = vmatpush.msra.mxu0 0.0
  %332 = vmatpush.msra.mxu0 0.0
  %333 = vmatpush.msra.mxu0 0.0
  %334 = vmatpush.msra.mxu0 0.0
  %335 = vmatpush.msra.mxu0 %v177
  %336 = vmatpush.msra.mxu0 %v121
  %337 = vmatpush.msra.mxu0 %v105
  %338 = vmatpush.msra.mxu0 %v89
  %339 = vmatpush.msra.mxu0 %v73
  %340 = vmatpush.msra.mxu0 %v57
  %341 = vmatpush.msra.mxu0 %v41
  %342 = vmatmul.f32.gmra.mxu0 %v155
  %v343 = vpop.f32.mrf.mxu0
  %v344 = vadd.f32 %v151, %v343
  %345 = vdwg.mxu0
  %346 = vmatpush.msra.mxu0 0.0
  %347 = vmatpush.msra.mxu0 0.0
  %348 = vmatpush.msra.mxu0 0.0
  %349 = vmatpush.msra.mxu0 0.0
  %350 = vmatpush.msra.mxu0 0.0
  %351 = vmatpush.msra.mxu0 0.0
  %352 = vmatpush.msra.mxu0 0.0
  %353 = vmatpush.msra.mxu0 0.0
  %354 = vmatpush.msra.mxu0 0.0
  %355 = vmatpush.msra.mxu0 %v180
  %356 = vmatpush.msra.mxu0 %v122
  %357 = vmatpush.msra.mxu0 %v106
  %358 = vmatpush.msra.mxu0 %v90
  %359 = vmatpush.msra.mxu0 %v74
  %360 = vmatpush.msra.mxu0 %v58
  %361 = vmatpush.msra.mxu0 %v42
  %362 = vmatmul.f32.gmra.mxu0 %v155
  %v363 = vpop.f32.mrf.mxu0
  %v364 = vadd.f32 %v151, %v363
  %365 = vdwg.mxu0
  %366 = vmatpush.msra.mxu0 0.0
  %367 = vmatpush.msra.mxu0 0.0
  %368 = vmatpush.msra.mxu0 0.0
  %369 = vmatpush.msra.mxu0 0.0
  %370 = vmatpush.msra.mxu0 0.0
  %371 = vmatpush.msra.mxu0 0.0
  %372 = vmatpush.msra.mxu0 0.0
  %373 = vmatpush.msra.mxu0 0.0
  %374 = vmatpush.msra.mxu0 0.0
  %375 = vmatpush.msra.mxu0 %v183
  %376 = vmatpush.msra.mxu0 %v123
  %377 = vmatpush.msra.mxu0 %v107
  %378 = vmatpush.msra.mxu0 %v91
  %379 = vmatpush.msra.mxu0 %v75
  %380 = vmatpush.msra.mxu0 %v59
  %381 = vmatpush.msra.mxu0 %v43
  %382 = vmatmul.f32.gmra.mxu0 %v155
  %v383 = vpop.f32.mrf.mxu0
  %v384 = vadd.f32 %v151, %v383
  %385 = vdwg.mxu0
  %386 = vmatpush.msra.mxu0 0.0
  %387 = vmatpush.msra.mxu0 0.0
  %388 = vmatpush.msra.mxu0 0.0
  %389 = vmatpush.msra.mxu0 0.0
  %390 = vmatpush.msra.mxu0 0.0
  %391 = vmatpush.msra.mxu0 0.0
  %392 = vmatpush.msra.mxu0 0.0
  %393 = vmatpush.msra.mxu0 0.0
  %394 = vmatpush.msra.mxu0 0.0
  %395 = vmatpush.msra.mxu0 %v186
  %396 = vmatpush.msra.mxu0 %v124
  %397 = vmatpush.msra.mxu0 %v108
  %398 = vmatpush.msra.mxu0 %v92
  %399 = vmatpush.msra.mxu0 %v76
  %400 = vmatpush.msra.mxu0 %v60
  %401 = vmatpush.msra.mxu0 %v44
  %402 = vmatmul.f32.gmra.mxu0 %v155
  %v403 = vpop.f32.mrf.mxu0
  %v404 = vadd.f32 %v151, %v403
  %405 = vdwg.mxu0
  %406 = vmatpush.msra.mxu0 0.0
  %407 = vmatpush.msra.mxu0 0.0
  %408 = vmatpush.msra.mxu0 0.0
  %409 = vmatpush.msra.mxu0 0.0
  %410 = vmatpush.msra.mxu0 0.0
  %411 = vmatpush.msra.mxu0 0.0
  %412 = vmatpush.msra.mxu0 0.0
  %413 = vmatpush.msra.mxu0 0.0
  %414 = vmatpush.msra.mxu0 0.0
  %415 = vmatpush.msra.mxu0 %v189
  %416 = vmatpush.msra.mxu0 %v125
  %417 = vmatpush.msra.mxu0 %v109
  %418 = vmatpush.msra.mxu0 %v93
  %419 = vmatpush.msra.mxu0 %v77
  %420 = vmatpush.msra.mxu0 %v61
  %421 = vmatpush.msra.mxu0 %v45
  %422 = vmatmul.f32.gmra.mxu0 %v155
  %v423 = vpop.f32.mrf.mxu0
  %v424 = vadd.f32 %v151, %v423
  %425 = vdwg.mxu0
  %426 = vmatpush.msra.mxu0 0.0
  %427 = vmatpush.msra.mxu0 0.0
  %428 = vmatpush.msra.mxu0 0.0
  %429 = vmatpush.msra.mxu0 0.0
  %430 = vmatpush.msra.mxu0 0.0
  %431 = vmatpush.msra.mxu0 0.0
  %432 = vmatpush.msra.mxu0 0.0
  %433 = vmatpush.msra.mxu0 0.0
  %434 = vmatpush.msra.mxu0 0.0
  %435 = vmatpush.msra.mxu0 %v192
  %436 = vmatpush.msra.mxu0 %v126
  %437 = vmatpush.msra.mxu0 %v110
  %438 = vmatpush.msra.mxu0 %v94
  %439 = vmatpush.msra.mxu0 %v78
  %440 = vmatpush.msra.mxu0 %v62
  %441 = vmatpush.msra.mxu0 %v46
  %442 = vmatmul.f32.gmra.mxu0 %v155
  %v443 = vpop.f32.mrf.mxu0
  %v444 = vadd.f32 %v151, %v443
  %445 = vdwg.mxu0
  %446 = vmatpush.msra.mxu0 0.0
  %447 = vmatpush.msra.mxu0 0.0
  %448 = vmatpush.msra.mxu0 0.0
  %449 = vmatpush.msra.mxu0 0.0
  %450 = vmatpush.msra.mxu0 0.0
  %451 = vmatpush.msra.mxu0 0.0
  %452 = vmatpush.msra.mxu0 0.0
  %453 = vmatpush.msra.mxu0 0.0
  %454 = vmatpush.msra.mxu0 0.0
  %455 = vmatpush.msra.mxu0 %v195
  %456 = vmatpush.msra.mxu0 %v127
  %457 = vmatpush.msra.mxu0 %v111
  %458 = vmatpush.msra.mxu0 %v95
  %459 = vmatpush.msra.mxu0 %v79
  %460 = vmatpush.msra.mxu0 %v63
  %461 = vmatpush.msra.mxu0 %v47
  %462 = vmatmul.f32.gmra.mxu0 %v155
  %v463 = vpop.f32.mrf.mxu0
  %v464 = vadd.f32 %v151, %v463
  %465 = vdwg.mxu0
  %466 = vmatpush.msra.mxu0 0.0
  %467 = vmatpush.msra.mxu0 0.0
  %468 = vmatpush.msra.mxu0 0.0
  %469 = vmatpush.msra.mxu0 0.0
  %470 = vmatpush.msra.mxu0 0.0
  %471 = vmatpush.msra.mxu0 0.0
  %472 = vmatpush.msra.mxu0 0.0
  %473 = vmatpush.msra.mxu0 0.0
  %474 = vmatpush.msra.mxu0 0.0
  %475 = vmatpush.msra.mxu0 %v198
  %476 = vmatpush.msra.mxu0 %v128
  %477 = vmatpush.msra.mxu0 %v112
  %478 = vmatpush.msra.mxu0 %v96
  %479 = vmatpush.msra.mxu0 %v80
  %480 = vmatpush.msra.mxu0 %v64
  %481 = vmatpush.msra.mxu0 %v48
  %482 = vmatmul.f32.gmra.mxu0 %v155
  %v483 = vpop.f32.mrf.mxu0
  %v484 = vadd.f32 %v151, %v483
  %485 = vdwg.mxu0
  %486 = vmatpush.msra.mxu0 0.0
  %487 = vmatpush.msra.mxu0 0.0
  %488 = vmatpush.msra.mxu0 0.0
  %489 = vmatpush.msra.mxu0 0.0
  %490 = vmatpush.msra.mxu0 0.0
  %491 = vmatpush.msra.mxu0 0.0
  %492 = vmatpush.msra.mxu0 0.0
  %493 = vmatpush.msra.mxu0 0.0
  %494 = vmatpush.msra.mxu0 0.0
  %495 = vmatpush.msra.mxu0 %v201
  %496 = vmatpush.msra.mxu0 %v129
  %497 = vmatpush.msra.mxu0 %v113
  %498 = vmatpush.msra.mxu0 %v97
  %499 = vmatpush.msra.mxu0 %v81
  %500 = vmatpush.msra.mxu0 %v65
  %501 = vmatpush.msra.mxu0 %v49
  %502 = vmatmul.f32.gmra.mxu0 %v155
  %v503 = vpop.f32.mrf.mxu0
  %v504 = vadd.f32 %v151, %v503
  %505 = vdwg.mxu0
  %506 = vmatpush.msra.mxu0 0.0
  %507 = vmatpush.msra.mxu0 0.0
  %508 = vmatpush.msra.mxu0 0.0
  %509 = vmatpush.msra.mxu0 0.0
  %510 = vmatpush.msra.mxu0 0.0
  %511 = vmatpush.msra.mxu0 0.0
  %512 = vmatpush.msra.mxu0 0.0
  %513 = vmatpush.msra.mxu0 0.0
  %514 = vmatpush.msra.mxu0 0.0
  %515 = vmatpush.msra.mxu0 %v204
  %516 = vmatpush.msra.mxu0 %v130
  %517 = vmatpush.msra.mxu0 %v114
  %518 = vmatpush.msra.mxu0 %v98
  %519 = vmatpush.msra.mxu0 %v82
  %520 = vmatpush.msra.mxu0 %v66
  %521 = vmatpush.msra.mxu0 %v50
  %522 = vmatmul.f32.gmra.mxu0 %v155
  %v523 = vpop.f32.mrf.mxu0
  %v524 = vadd.f32 %v151, %v523
  %525 = vdwg.mxu0
  %v526 = vmax.f32 %v224, 0.0
  %v527 = vmax.f32 %v244, 0.0
  %v528 = vmax.f32 %v264, 0.0
  %v529 = vmax.f32 %v284, 0.0
  %v530 = vmax.f32 %v304, 0.0
  %v531 = vmax.f32 %v324, 0.0
  %v532 = vmax.f32 %v344, 0.0
  %v533 = vmax.f32 %v364, 0.0
  %v534 = vmax.f32 %v384, 0.0
  %v535 = vmax.f32 %v404, 0.0
  %v536 = vmax.f32 %v424, 0.0
  %v537 = vmax.f32 %v444, 0.0
  %v538 = vmax.f32 %v464, 0.0
  %v539 = vmax.f32 %v484, 0.0
  %v540 = vmax.f32 %v504, 0.0
  %v541 = vmax.f32 %v524, 0.0
  %v542 = vmax.f32 %v526, %v527
  %v543 = vmax.f32 %v530, %v531
  %v544 = vmax.f32 %v542, %v543
  %v545 = vmax.f32 %v528, %v529
  %v546 = vmax.f32 %v532, %v533
  %v547 = vmax.f32 %v545, %v546
  %v548 = vmax.f32 %v534, %v535
  %v549 = vmax.f32 %v538, %v539
  %v550 = vmax.f32 %v548, %v549
  %v551 = vmax.f32 %v536, %v537
  %v552 = vmax.f32 %v540, %v541
  %v553 = vmax.f32 %v551, %v552
  %554 = vrot.lane.b32.xlu0 %v544, 127
  %v555 = vpop.permute.xlu0 %554
  %556 = vrot.lane.b32.xlu0 %v547, 127
  %v557 = vpop.permute.xlu0 %556
  %558 = vrot.lane.b32.xlu0 %v550, 127
  %v559 = vpop.permute.xlu0 %558
  %560 = vrot.lane.b32.xlu0 %v553, 127
  %v561 = vpop.permute.xlu0 %560
  %562 = vrot.lane.b32.xlu0 %v544, 120
  %v563 = vpop.permute.xlu0 %562
  %564 = vrot.lane.b32.xlu0 %v547, 120
  %v565 = vpop.permute.xlu0 %564
  %566 = vrot.lane.b32.xlu0 %v544, 119
  %v567 = vpop.permute.xlu0 %566
  %568 = vrot.lane.b32.xlu0 %v547, 119
  %v569 = vpop.permute.xlu0 %568
  %570 = vrot.lane.b32.xlu0 %v550, 120
  %v571 = vpop.permute.xlu0 %570
  %572 = vrot.lane.b32.xlu0 %v553, 120
  %v573 = vpop.permute.xlu0 %572
  %574 = vrot.lane.b32.xlu0 %v550, 119
  %v575 = vpop.permute.xlu0 %574
  %576 = vrot.lane.b32.xlu0 %v553, 119
  %v577 = vpop.permute.xlu0 %576
  %578 = vrot.lane.b32.xlu0 %v544, 126
  %v579 = vpop.permute.xlu0 %578
  %580 = vrot.lane.b32.xlu0 %v550, 126
  %v581 = vpop.permute.xlu0 %580
  %582 = vrot.lane.b32.xlu0 %v544, 118
  %v583 = vpop.permute.xlu0 %582
  %584 = vrot.lane.b32.xlu0 %v550, 118
  %v585 = vpop.permute.xlu0 %584
  %586 = vrot.lane.b32.xlu0 %v544, 112
  %v587 = vpop.permute.xlu0 %586
  %588 = vrot.lane.b32.xlu0 %v547, 112
  %v589 = vpop.permute.xlu0 %588
  %590 = vrot.lane.b32.xlu0 %v544, 111
  %v591 = vpop.permute.xlu0 %590
  %592 = vrot.lane.b32.xlu0 %v547, 111
  %v593 = vpop.permute.xlu0 %592
  %594 = vrot.lane.b32.xlu0 %v544, 110
  %v595 = vpop.permute.xlu0 %594
  %v596 = vld [vmem:[%s3] sm:$0xff]
  %v597 = vld [vmem:[%s3 + $0x8] sm:$0xf]
  %598 = vmatpush.msra.mxu0 %v577
  %599 = vmatpush.msra.mxu0 %v575
  %600 = vmatpush.msra.mxu0 %v573
  %601 = vmatpush.msra.mxu0 %v571
  %602 = vmatpush.msra.mxu0 %v569
  %603 = vmatpush.msra.mxu0 %v567
  %604 = vmatpush.msra.mxu0 %v565
  %605 = vmatpush.msra.mxu0 %v563
  %606 = vmatpush.msra.mxu0 %v561
  %607 = vmatpush.msra.mxu0 %v559
  %608 = vmatpush.msra.mxu0 %v553
  %609 = vmatpush.msra.mxu0 %v550
  %610 = vmatpush.msra.mxu0 %v557
  %611 = vmatpush.msra.mxu0 %v555
  %612 = vmatpush.msra.mxu0 %v547
  %613 = vmatpush.msra.mxu0 %v544
  %614 = vmatmul.f32.gmra.mxu0 %v596
  %v615 = vpop.f32.mrf.mxu0
  %v616 = vadd.f32 0.0, %v615
  %617 = vmatmul.f32.gmra.mxu0 %v597
  %v618 = vpop.f32.mrf.mxu0
  %v619 = vadd.f32 0.0, %v618
  %620 = vdwg.mxu0
  %621 = vmatpush.msra.mxu0 %v585
  %622 = vmatpush.msra.mxu0 %v577
  %623 = vmatpush.msra.mxu0 %v575
  %624 = vmatpush.msra.mxu0 %v573
  %625 = vmatpush.msra.mxu0 %v583
  %626 = vmatpush.msra.mxu0 %v569
  %627 = vmatpush.msra.mxu0 %v567
  %628 = vmatpush.msra.mxu0 %v565
  %629 = vmatpush.msra.mxu0 %v581
  %630 = vmatpush.msra.mxu0 %v561
  %631 = vmatpush.msra.mxu0 %v559
  %632 = vmatpush.msra.mxu0 %v553
  %633 = vmatpush.msra.mxu0 %v579
  %634 = vmatpush.msra.mxu0 %v557
  %635 = vmatpush.msra.mxu0 %v555
  %636 = vmatpush.msra.mxu0 %v547
  %637 = vmatmul.f32.gmra.mxu0 %v596
  %v638 = vpop.f32.mrf.mxu0
  %v639 = vadd.f32 0.0, %v638
  %640 = vmatmul.f32.gmra.mxu0 %v597
  %v641 = vpop.f32.mrf.mxu0
  %v642 = vadd.f32 0.0, %v641
  %643 = vdwg.mxu0
  %644 = vmatpush.msra.mxu0 %v593
  %645 = vmatpush.msra.mxu0 %v591
  %646 = vmatpush.msra.mxu0 %v589
  %647 = vmatpush.msra.mxu0 %v587
  %648 = vmatpush.msra.mxu0 %v577
  %649 = vmatpush.msra.mxu0 %v575
  %650 = vmatpush.msra.mxu0 %v573
  %651 = vmatpush.msra.mxu0 %v571
  %652 = vmatpush.msra.mxu0 %v569
  %653 = vmatpush.msra.mxu0 %v567
  %654 = vmatpush.msra.mxu0 %v565
  %655 = vmatpush.msra.mxu0 %v563
  %656 = vmatpush.msra.mxu0 %v561
  %657 = vmatpush.msra.mxu0 %v559
  %658 = vmatpush.msra.mxu0 %v553
  %659 = vmatpush.msra.mxu0 %v550
  %660 = vmatmul.f32.gmra.mxu0 %v596
  %v661 = vpop.f32.mrf.mxu0
  %v662 = vadd.f32 0.0, %v661
  %663 = vmatmul.f32.gmra.mxu0 %v597
  %v664 = vpop.f32.mrf.mxu0
  %v665 = vadd.f32 0.0, %v664
  %666 = vdwg.mxu0
  %667 = vmatpush.msra.mxu0 %v595
  %668 = vmatpush.msra.mxu0 %v593
  %669 = vmatpush.msra.mxu0 %v591
  %670 = vmatpush.msra.mxu0 %v589
  %671 = vmatpush.msra.mxu0 %v585
  %672 = vmatpush.msra.mxu0 %v577
  %673 = vmatpush.msra.mxu0 %v575
  %674 = vmatpush.msra.mxu0 %v573
  %675 = vmatpush.msra.mxu0 %v583
  %676 = vmatpush.msra.mxu0 %v569
  %677 = vmatpush.msra.mxu0 %v567
  %678 = vmatpush.msra.mxu0 %v565
  %679 = vmatpush.msra.mxu0 %v581
  %680 = vmatpush.msra.mxu0 %v561
  %681 = vmatpush.msra.mxu0 %v559
  %682 = vmatpush.msra.mxu0 %v553
  %683 = vmatmul.f32.gmra.mxu0 %v596
  %v684 = vpop.f32.mrf.mxu0
  %v685 = vadd.f32 0.0, %v684
  %686 = vmatmul.f32.gmra.mxu0 %v597
  %v687 = vpop.f32.mrf.mxu0
  %v688 = vadd.f32 0.0, %v687
  %689 = vdwg.mxu0
  %v690 = vmax.f32 %v616, %v639
  %v691 = vmax.f32 %v619, %v642
  %v692 = vmax.f32 %v662, %v685
  %v693 = vmax.f32 %v665, %v688
  %v694 = vmax.f32 %v690, %v692
  %v695 = vmax.f32 %v691, %v693
  %v696 = vld [vmem:[%s4] sm:$0xff]
  %v697 = vld [vmem:[%s4 + $0x8] sm:$0xf]
  %699 = vset.pattern.permute.xlu0 0
  %700 = vperm.xlu0 %699, %v696
  %v701 = vpop.permute.xlu0 %700
  %704 = vset.pattern.permute.xlu0 0
  %705 = vperm.xlu0 %704, %v697
  %v706 = vpop.permute.xlu0 %705
  %v708 = vadd.f32 %v694, %v701
  %v709 = vadd.f32 %v695, %v706
  %v710 = vmax.f32 %v708, 0.0
  %v711 = vmax.f32 %v709, 0.0
  %v713 = vrot.slane %v710, 7
  %714 = vrot.lane.b32.xlu0 %v713, 64
  %v715 = vpop.permute.xlu0 %714
  %v717 = vsel %vm157, %v710, %v715
  %v718 = vrot.slane %v710, 1
  %720 = vrot.lane.b32.xlu0 %v710, 64
  %v721 = vpop.permute.xlu0 %720
  %v723 = vsel %vm157, %v718, %v721
  %v724 = vrot.slane %v710, 2
  %726 = vrot.lane.b32.xlu0 %v718, 64
  %v727 = vpop.permute.xlu0 %726
  %v729 = vsel %vm157, %v724, %v727
  %v730 = vrot.slane %v710, 3
  %732 = vrot.lane.b32.xlu0 %v724, 64
  %v733 = vpop.permute.xlu0 %732
  %v735 = vsel %vm157, %v730, %v733
  %v736 = vrot.slane %v710, 4
  %738 = vrot.lane.b32.xlu0 %v730, 64
  %v739 = vpop.permute.xlu0 %738
  %v741 = vsel %vm157, %v736, %v739
  %v742 = vrot.slane %v710, 5
  %744 = vrot.lane.b32.xlu0 %v736, 64
  %v745 = vpop.permute.xlu0 %744
  %v747 = vsel %vm157, %v742, %v745
  %v748 = vrot.slane %v710, 6
  %750 = vrot.lane.b32.xlu0 %v742, 64
  %v751 = vpop.permute.xlu0 %750
  %v753 = vsel %vm157, %v748, %v751
  %755 = vrot.lane.b32.xlu0 %v748, 64
  %v756 = vpop.permute.xlu0 %755
  %v758 = vsel %vm157, %v713, %v756
  %v760 = vrot.slane %v711, 7
  %761 = vrot.lane.b32.xlu0 %v760, 64
  %v762 = vpop.permute.xlu0 %761
  %v764 = vsel %vm157, %v711, %v762
  %v765 = vrot.slane %v711, 1
  %767 = vrot.lane.b32.xlu0 %v711, 64
  %v768 = vpop.permute.xlu0 %767
  %v770 = vsel %vm157, %v765, %v768
  %v771 = vrot.slane %v711, 2
  %773 = vrot.lane.b32.xlu0 %v765, 64
  %v774 = vpop.permute.xlu0 %773
  %v776 = vsel %vm157, %v771, %v774
  %v777 = vrot.slane %v711, 3
  %779 = vrot.lane.b32.xlu0 %v771, 64
  %v780 = vpop.permute.xlu0 %779
  %v782 = vsel %vm157, %v777, %v780
  %784 = vrot.lane.b32.xlu0 %v723, 64
  %v785 = vpop.permute.xlu0 %784
  %788 = vrot.lane.b32.xlu0 %v735, 64
  %v789 = vpop.permute.xlu0 %788
  %792 = vrot.lane.b32.xlu0 %v747, 64
  %v793 = vpop.permute.xlu0 %792
  %796 = vrot.lane.b32.xlu0 %v758, 64
  %v797 = vpop.permute.xlu0 %796
  %800 = vrot.lane.b32.xlu0 %v770, 64
  %v801 = vpop.permute.xlu0 %800
  %804 = vrot.lane.b32.xlu0 %v782, 64
  %v805 = vpop.permute.xlu0 %804
  %vm807 = vcmask 523264
  %v808 = vsel %vm807, %v717, %v785
  %v809 = vsel %vm807, %v729, %v789
  %v810 = vsel %vm807, %v741, %v793
  %v811 = vsel %vm807, %v753, %v797
  %v812 = vsel %vm807, %v764, %v801
  %v813 = vsel %vm807, %v776, %v805
  %v814 = vld [vmem:[%s5] sm:$0xff]
  %v815 = vld [vmem:[%s5 + $0x8] sm:$0xff]
  %v816 = vld [vmem:[%s5 + $0x10] sm:$0xff]
  %v817 = vld [vmem:[%s5 + $0x18] sm:$0xff]
  %v818 = vld [vmem:[%s5 + $0x20] sm:$0xff]
  %v819 = vld [vmem:[%s5 + $0x28] sm:$0xff]
  %v820 = vld [vmem:[%s5 + $0x30] sm:$0xff]
  %v821 = vld [vmem:[%s5 + $0x38] sm:$0xff]
  %v822 = vld [vmem:[%s5 + $0x40] sm:$0xff]
  %v823 = vld [vmem:[%s5 + $0x48] sm:$0xff]
  %v824 = vld [vmem:[%s5 + $0x50] sm:$0xff]
  %v825 = vld [vmem:[%s5 + $0x58] sm:$0xff]
  %v826 = vld [vmem:[%s5 + $0x60] sm:$0xff]
  %v827 = vld [vmem:[%s5 + $0x68] sm:$0xff]
  %v828 = vld [vmem:[%s5 + $0x70] sm:$0xff]
  %v829 = vld [vmem:[%s5 + $0x78] sm:$0xff]
  %v830 = vld [vmem:[%s5 + $0x80] sm:$0xff]
  %v831 = vld [vmem:[%s5 + $0x88] sm:$0xff]
  %v832 = vld [vmem:[%s5 + $0x90] sm:$0xff]
  %v833 = vld [vmem:[%s5 + $0x98] sm:$0xff]
  %v834 = vld [vmem:[%s5 + $0xa0] sm:$0xff]
  %v835 = vld [vmem:[%s5 + $0xa8] sm:$0xff]
  %v836 = vld [vmem:[%s5 + $0xb0] sm:$0xff]
  %v837 = vld [vmem:[%s5 + $0xb8] sm:$0xff]
  %v838 = vld [vmem:[%s5 + $0xc0] sm:$0xff]
  %v839 = vld [vmem:[%s5 + $0xc8] sm:$0xff]
  %v840 = vld [vmem:[%s5 + $0xd0] sm:$0xff]
  %v841 = vld [vmem:[%s5 + $0xd8] sm:$0xff]
  %v842 = vld [vmem:[%s5 + $0xe0] sm:$0xff]
  %v843 = vld [vmem:[%s5 + $0xe8] sm:$0xff]
  %v844 = vld [vmem:[%s5 + $0xf0] sm:$0xff]
  %v845 = vld [vmem:[%s5 + $0xf8] sm:$0xff]
  %v846 = vld [vmem:[%s5 + $0x100] sm:$0xff]
  %v847 = vld [vmem:[%s5 + $0x108] sm:$0xff]
  %v848 = vld [vmem:[%s5 + $0x110] sm:$0xff]
  %v849 = vld [vmem:[%s5 + $0x118] sm:$0xff]
  %v850 = vld [vmem:[%s5 + $0x120] sm:$0xff]
  %v851 = vld [vmem:[%s5 + $0x128] sm:$0xff]
  %v852 = vld [vmem:[%s5 + $0x130] sm:$0xff]
  %v853 = vld [vmem:[%s5 + $0x138] sm:$0xff]
  %v854 = vld [vmem:[%s5 + $0x140] sm:$0xff]
  %v855 = vld [vmem:[%s5 + $0x148] sm:$0xff]
  %v856 = vld [vmem:[%s5 + $0x150] sm:$0xff]
  %v857 = vld [vmem:[%s5 + $0x158] sm:$0xff]
  %v858 = vld [vmem:[%s5 + $0x160] sm:$0xff]
  %v859 = vld [vmem:[%s5 + $0x168] sm:$0xff]
  %v860 = vld [vmem:[%s5 + $0x170] sm:$0xff]
  %v861 = vld [vmem:[%s5 + $0x178] sm:$0xff]
  %v862 = vld [vmem:[%s5 + $0x180] sm:$0xff]
  %v863 = vld [vmem:[%s5 + $0x188] sm:$0xff]
  %v864 = vld [vmem:[%s5 + $0x190] sm:$0xff]
  %v865 = vld [vmem:[%s5 + $0x198] sm:$0xff]
  %v866 = vld [vmem:[%s5 + $0x1a0] sm:$0xff]
  %v867 = vld [vmem:[%s5 + $0x1a8] sm:$0xff]
  %v868 = vld [vmem:[%s5 + $0x1b0] sm:$0xff]
  %v869 = vld [vmem:[%s5 + $0x1b8] sm:$0xff]
  %v870 = vld [vmem:[%s5 + $0x1c0] sm:$0xff]
  %v871 = vld [vmem:[%s5 + $0x1c8] sm:$0xff]
  %v872 = vld [vmem:[%s5 + $0x1d0] sm:$0xff]
  %v873 = vld [vmem:[%s5 + $0x1d8] sm:$0xff]
  %v874 = vld [vmem:[%s5 + $0x1e0] sm:$0xff]
  %v875 = vld [vmem:[%s5 + $0x1e8] sm:$0xff]
  %v876 = vld [vmem:[%s5 + $0x1f0] sm:$0xff]
  %v877 = vld [vmem:[%s5 + $0x1f8] sm:$0xff]
  %v878 = vld [vmem:[%s5 + $0x200] sm:$0xff]
  %v879 = vld [vmem:[%s5 + $0x208] sm:$0xff]
  %v880 = vld [vmem:[%s5 + $0x210] sm:$0xff]
  %v881 = vld [vmem:[%s5 + $0x218] sm:$0xff]
  %v882 = vld [vmem:[%s5 + $0x220] sm:$0xff]
  %v883 = vld [vmem:[%s5 + $0x228] sm:$0xff]
  %v884 = vld [vmem:[%s5 + $0x230] sm:$0xff]
  %v885 = vld [vmem:[%s5 + $0x238] sm:$0xff]
  %v886 = vld [vmem:[%s5 + $0x240] sm:$0xff]
  %v887 = vld [vmem:[%s5 + $0x248] sm:$0xff]
  %v888 = vld [vmem:[%s5 + $0x250] sm:$0xff]
  %v889 = vld [vmem:[%s5 + $0x258] sm:$0xff]
  %v890 = vld [vmem:[%s5 + $0x260] sm:$0xff]
  %v891 = vld [vmem:[%s5 + $0x268] sm:$0xff]
  %v892 = vld [vmem:[%s5 + $0x270] sm:$0xff]
  %v893 = vld [vmem:[%s5 + $0x278] sm:$0xff]
  %v894 = vld [vmem:[%s5 + $0x280] sm:$0xff]
  %v895 = vld [vmem:[%s5 + $0x288] sm:$0xff]
  %v896 = vld [vmem:[%s5 + $0x290] sm:$0xff]
  %v897 = vld [vmem:[%s5 + $0x298] sm:$0xff]
  %v898 = vld [vmem:[%s5 + $0x2a0] sm:$0xff]
  %v899 = vld [vmem:[%s5 + $0x2a8] sm:$0xff]
  %v900 = vld [vmem:[%s5 + $0x2b0] sm:$0xff]
  %v901 = vld [vmem:[%s5 + $0x2b8] sm:$0xff]
  %v902 = vld [vmem:[%s5 + $0x2c0] sm:$0xff]
  %v903 = vld [vmem:[%s5 + $0x2c8] sm:$0xff]
  %v904 = vld [vmem:[%s5 + $0x2d0] sm:$0xff]
  %v905 = vld [vmem:[%s5 + $0x2d8] sm:$0xff]
  %v906 = vld [vmem:[%s5 + $0x2e0] sm:$0xff]
  %v907 = vld [vmem:[%s5 + $0x2e8] sm:$0xff]
  %v908 = vld [vmem:[%s5 + $0x2f0] sm:$0xff]
  %v909 = vld [vmem:[%s5 + $0x2f8] sm:$0xff]
  %v910 = vld [vmem:[%s5 + $0x300] sm:$0xff]
  %v911 = vld [vmem:[%s5 + $0x308] sm:$0xff]
  %v912 = vld [vmem:[%s5 + $0x310] sm:$0xff]
  %v913 = vld [vmem:[%s5 + $0x318] sm:$0xff]
  %v914 = vld [vmem:[%s5 + $0x320] sm:$0xff]
  %v915 = vld [vmem:[%s5 + $0x328] sm:$0xff]
  %v916 = vld [vmem:[%s5 + $0x330] sm:$0xff]
  %v917 = vld [vmem:[%s5 + $0x338] sm:$0xff]
  %v918 = vld [vmem:[%s5 + $0x340] sm:$0xff]
  %v919 = vld [vmem:[%s5 + $0x348] sm:$0xff]
  %v920 = vld [vmem:[%s5 + $0x350] sm:$0xff]
  %v921 = vld [vmem:[%s5 + $0x358] sm:$0xff]
  %v922 = vld [vmem:[%s5 + $0x360] sm:$0xff]
  %v923 = vld [vmem:[%s5 + $0x368] sm:$0xff]
  %v924 = vld [vmem:[%s5 + $0x370] sm:$0xff]
  %v925 = vld [vmem:[%s5 + $0x378] sm:$0xff]
  %v926 = vld [vmem:[%s5 + $0x380] sm:$0xff]
  %v927 = vld [vmem:[%s5 + $0x388] sm:$0xff]
  %v928 = vld [vmem:[%s5 + $0x390] sm:$0xff]
  %v929 = vld [vmem:[%s5 + $0x398] sm:$0xff]
  %v930 = vld [vmem:[%s5 + $0x3a0] sm:$0xff]
  %v931 = vld [vmem:[%s5 + $0x3a8] sm:$0xff]
  %v932 = vld [vmem:[%s5 + $0x3b0] sm:$0xff]
  %v933 = vld [vmem:[%s5 + $0x3b8] sm:$0xff]
  %v934 = vld [vmem:[%s5 + $0x3c0] sm:$0xff]
  %v935 = vld [vmem:[%s5 + $0x3c8] sm:$0xff]
  %v936 = vld [vmem:[%s5 + $0x3d0] sm:$0xff]
  %v937 = vld [vmem:[%s5 + $0x3d8] sm:$0xff]
  %v938 = vld [vmem:[%s5 + $0x3e0] sm:$0xff]
  %v939 = vld [vmem:[%s5 + $0x3e8] sm:$0xff]
  %v940 = vld [vmem:[%s5 + $0x3f0] sm:$0xff]
  %v941 = vld [vmem:[%s5 + $0x3f8] sm:$0xff]
  %v942 = vld [vmem:[%s5 + $0x400] sm:$0xff]
  %v943 = vld [vmem:[%s5 + $0x408] sm:$0xff]
  %v944 = vld [vmem:[%s5 + $0x410] sm:$0xff]
  %v945 = vld [vmem:[%s5 + $0x418] sm:$0xff]
  %v946 = vld [vmem:[%s5 + $0x420] sm:$0xff]
  %v947 = vld [vmem:[%s5 + $0x428] sm:$0xff]
  %v948 = vld [vmem:[%s5 + $0x430] sm:$0xff]
  %v949 = vld [vmem:[%s5 + $0x438] sm:$0xff]
  %v950 = vld [vmem:[%s5 + $0x440] sm:$0xff]
  %v951 = vld [vmem:[%s5 + $0x448] sm:$0xff]
  %v952 = vld [vmem:[%s5 + $0x450] sm:$0xff]
  %v953 = vld [vmem:[%s5 + $0x458] sm:$0xff]
  %v954 = vld [vmem:[%s5 + $0x460] sm:$0xff]
  %v955 = vld [vmem:[%s5 + $0x468] sm:$0xff]
  %v956 = vld [vmem:[%s5 + $0x470] sm:$0xff]
  %v957 = vld [vmem:[%s5 + $0x478] sm:$0xff]
  %v958 = vld [vmem:[%s5 + $0x480] sm:$0xff]
  %v959 = vld [vmem:[%s5 + $0x488] sm:$0xff]
  %v960 = vld [vmem:[%s5 + $0x490] sm:$0xff]
  %v961 = vld [vmem:[%s5 + $0x498] sm:$0xff]
  %v962 = vld [vmem:[%s5 + $0x4a0] sm:$0xff]
  %v963 = vld [vmem:[%s5 + $0x4a8] sm:$0xff]
  %v964 = vld [vmem:[%s5 + $0x4b0] sm:$0xff]
  %v965 = vld [vmem:[%s5 + $0x4b8] sm:$0xff]
  %v966 = vld [vmem:[%s5 + $0x4c0] sm:$0xff]
  %v967 = vld [vmem:[%s5 + $0x4c8] sm:$0xff]
  %v968 = vld [vmem:[%s5 + $0x4d0] sm:$0xff]
  %v969 = vld [vmem:[%s5 + $0x4d8] sm:$0xff]
  %v970 = vld [vmem:[%s5 + $0x4e0] sm:$0xff]
  %v971 = vld [vmem:[%s5 + $0x4e8] sm:$0xff]
  %v972 = vld [vmem:[%s5 + $0x4f0] sm:$0xff]
  %v973 = vld [vmem:[%s5 + $0x4f8] sm:$0xff]
  %v974 = vld [vmem:[%s5 + $0x500] sm:$0xff]
  %v975 = vld [vmem:[%s5 + $0x508] sm:$0xff]
  %v976 = vld [vmem:[%s5 + $0x510] sm:$0xff]
  %v977 = vld [vmem:[%s5 + $0x518] sm:$0xff]
  %v978 = vld [vmem:[%s5 + $0x520] sm:$0xff]
  %v979 = vld [vmem:[%s5 + $0x528] sm:$0xff]
  %v980 = vld [vmem:[%s5 + $0x530] sm:$0xff]
  %v981 = vld [vmem:[%s5 + $0x538] sm:$0xff]
  %v982 = vld [vmem:[%s5 + $0x540] sm:$0xff]
  %v983 = vld [vmem:[%s5 + $0x548] sm:$0xff]
  %v984 = vld [vmem:[%s5 + $0x550] sm:$0xff]
  %v985 = vld [vmem:[%s5 + $0x558] sm:$0xff]
  %v986 = vld [vmem:[%s5 + $0x560] sm:$0xff]
  %v987 = vld [vmem:[%s5 + $0x568] sm:$0xff]
  %v988 = vld [vmem:[%s5 + $0x570] sm:$0xff]
  %v989 = vld [vmem:[%s5 + $0x578] sm:$0xff]
  %v990 = vld [vmem:[%s5 + $0x580] sm:$0xff]
  %v991 = vld [vmem:[%s5 + $0x588] sm:$0xff]
  %v992 = vld [vmem:[%s5 + $0x590] sm:$0xff]
  %v993 = vld [vmem:[%s5 + $0x598] sm:$0xff]
  %v994 = vld [vmem:[%s5 + $0x5a0] sm:$0xff]
  %v995 = vld [vmem:[%s5 + $0x5a8] sm:$0xff]
  %v996 = vld [vmem:[%s5 + $0x5b0] sm:$0xff]
  %v997 = vld [vmem:[%s5 + $0x5b8] sm:$0xff]
  %v998 = vld [vmem:[%s5 + $0x5c0] sm:$0xff]
  %v999 = vld [vmem:[%s5 + $0x5c8] sm:$0xff]
  %v1000 = vld [vmem:[%s5 + $0x5d0] sm:$0xff]
  %v1001 = vld [vmem:[%s5 + $0x5d8] sm:$0xff]
  %v1002 = vld [vmem:[%s5 + $0x5e0] sm:$0xff]
  %v1003 = vld [vmem:[%s5 + $0x5e8] sm:$0xff]
  %v1004 = vld [vmem:[%s5 + $0x5f0] sm:$0xff]
  %v1005 = vld [vmem:[%s5 + $0x5f8] sm:$0xff]
  %v1006 = vld [vmem:[%s6] sm:$0x3]
  %v1008 = vperm.slane %v1006, 0
  %v1009 = vperm.slane %v1006, 1
  %1012 = vmatpush.msra.mxu0 %v844
  %1013 = vmatpush.msra.mxu0 %v842
  %1014 = vmatpush.msra.mxu0 %v840
  %1015 = vmatpush.msra.mxu0 %v838
  %1016 = vmatpush.msra.mxu0 %v836
  %1017 = vmatpush.msra.mxu0 %v834
  %1018 = vmatpush.msra.mxu0 %v832
  %1019 = vmatpush.msra.mxu0 %v830
  %1020 = vmatpush.msra.mxu0 %v828
  %1021 = vmatpush.msra.mxu0 %v826
  %1022 = vmatpush.msra.mxu0 %v824
  %1023 = vmatpush.msra.mxu0 %v822
  %1024 = vmatpush.msra.mxu0 %v820
  %1025 = vmatpush.msra.mxu0 %v818
  %1026 = vmatpush.msra.mxu0 %v816
  %1027 = vmatpush.msra.mxu0 %v814
  %1028 = vmatmul.f32.gmra.mxu0 %v808
  %v1029 = vpop.f32.mrf.mxu0
  %v1030 = vadd.f32 %v1008, %v1029
  %1031 = vdwg.mxu0
  %1032 = vmatpush.msra.mxu0 %v876
  %1033 = vmatpush.msra.mxu0 %v874
  %1034 = vmatpush.msra.mxu0 %v872
  %1035 = vmatpush.msra.mxu0 %v870
  %1036 = vmatpush.msra.mxu0 %v868
  %1037 = vmatpush.msra.mxu0 %v866
  %1038 = vmatpush.msra.mxu0 %v864
  %1039 = vmatpush.msra.mxu0 %v862
  %1040 = vmatpush.msra.mxu0 %v860
  %1041 = vmatpush.msra.mxu0 %v858
  %1042 = vmatpush.msra.mxu0 %v856
  %1043 = vmatpush.msra.mxu0 %v854
  %1044 = vmatpush.msra.mxu0 %v852
  %1045 = vmatpush.msra.mxu0 %v850
  %1046 = vmatpush.msra.mxu0 %v848
  %1047 = vmatpush.msra.mxu0 %v846
  %1048 = vmatmul.f32.gmra.mxu0 %v809
  %v1049 = vpop.f32.mrf.mxu0
  %v1050 = vadd.f32 %v1030, %v1049
  %1051 = vdwg.mxu0
  %1052 = vmatpush.msra.mxu0 %v908
  %1053 = vmatpush.msra.mxu0 %v906
  %1054 = vmatpush.msra.mxu0 %v904
  %1055 = vmatpush.msra.mxu0 %v902
  %1056 = vmatpush.msra.mxu0 %v900
  %1057 = vmatpush.msra.mxu0 %v898
  %1058 = vmatpush.msra.mxu0 %v896
  %1059 = vmatpush.msra.mxu0 %v894
  %1060 = vmatpush.msra.mxu0 %v892
  %1061 = vmatpush.msra.mxu0 %v890
  %1062 = vmatpush.msra.mxu0 %v888
  %1063 = vmatpush.msra.mxu0 %v886
  %1064 = vmatpush.msra.mxu0 %v884
  %1065 = vmatpush.msra.mxu0 %v882
  %1066 = vmatpush.msra.mxu0 %v880
  %1067 = vmatpush.msra.mxu0 %v878
  %1068 = vmatmul.f32.gmra.mxu0 %v810
  %v1069 = vpop.f32.mrf.mxu0
  %v1070 = vadd.f32 %v1050, %v1069
  %1071 = vdwg.mxu0
  %1072 = vmatpush.msra.mxu0 %v940
  %1073 = vmatpush.msra.mxu0 %v938
  %1074 = vmatpush.msra.mxu0 %v936
  %1075 = vmatpush.msra.mxu0 %v934
  %1076 = vmatpush.msra.mxu0 %v932
  %1077 = vmatpush.msra.mxu0 %v930
  %1078 = vmatpush.msra.mxu0 %v928
  %1079 = vmatpush.msra.mxu0 %v926
  %1080 = vmatpush.msra.mxu0 %v924
  %1081 = vmatpush.msra.mxu0 %v922
  %1082 = vmatpush.msra.mxu0 %v920
  %1083 = vmatpush.msra.mxu0 %v918
  %1084 = vmatpush.msra.mxu0 %v916
  %1085 = vmatpush.msra.mxu0 %v914
  %1086 = vmatpush.msra.mxu0 %v912
  %1087 = vmatpush.msra.mxu0 %v910
  %1088 = vmatmul.f32.gmra.mxu0 %v811
  %v1089 = vpop.f32.mrf.mxu0
  %v1090 = vadd.f32 %v1070, %v1089
  %1091 = vdwg.mxu0
  %1092 = vmatpush.msra.mxu0 %v972
  %1093 = vmatpush.msra.mxu0 %v970
  %1094 = vmatpush.msra.mxu0 %v968
  %1095 = vmatpush.msra.mxu0 %v966
  %1096 = vmatpush.msra.mxu0 %v964
  %1097 = vmatpush.msra.mxu0 %v962
  %1098 = vmatpush.msra.mxu0 %v960
  %1099 = vmatpush.msra.mxu0 %v958
  %1100 = vmatpush.msra.mxu0 %v956
  %1101 = vmatpush.msra.mxu0 %v954
  %1102 = vmatpush.msra.mxu0 %v952
  %1103 = vmatpush.msra.mxu0 %v950
  %1104 = vmatpush.msra.mxu0 %v948
  %1105 = vmatpush.msra.mxu0 %v946
  %1106 = vmatpush.msra.mxu0 %v944
  %1107 = vmatpush.msra.mxu0 %v942
  %1108 = vmatmul.f32.gmra.mxu0 %v812
  %v1109 = vpop.f32.mrf.mxu0
  %v1110 = vadd.f32 %v1090, %v1109
  %1111 = vdwg.mxu0
  %1112 = vmatpush.msra.mxu0 %v1004
  %1113 = vmatpush.msra.mxu0 %v1002
  %1114 = vmatpush.msra.mxu0 %v1000
  %1115 = vmatpush.msra.mxu0 %v998
  %1116 = vmatpush.msra.mxu0 %v996
  %1117 = vmatpush.msra.mxu0 %v994
  %1118 = vmatpush.msra.mxu0 %v992
  %1119 = vmatpush.msra.mxu0 %v990
  %1120 = vmatpush.msra.mxu0 %v988
  %1121 = vmatpush.msra.mxu0 %v986
  %1122 = vmatpush.msra.mxu0 %v984
  %1123 = vmatpush.msra.mxu0 %v982
  %1124 = vmatpush.msra.mxu0 %v980
  %1125 = vmatpush.msra.mxu0 %v978
  %1126 = vmatpush.msra.mxu0 %v976
  %1127 = vmatpush.msra.mxu0 %v974
  %1128 = vmatmul.f32.gmra.mxu0 %v813
  %v1129 = vpop.f32.mrf.mxu0
  %v1130 = vadd.f32 %v1110, %v1129
  %1131 = vdwg.mxu0
  %1132 = vmatpush.msra.mxu0 %v845
  %1133 = vmatpush.msra.mxu0 %v843
  %1134 = vmatpush.msra.mxu0 %v841
  %1135 = vmatpush.msra.mxu0 %v839
  %1136 = vmatpush.msra.mxu0 %v837
  %1137 = vmatpush.msra.mxu0 %v835
  %1138 = vmatpush.msra.mxu0 %v833
  %1139 = vmatpush.msra.mxu0 %v831
  %1140 = vmatpush.msra.mxu0 %v829
  %1141 = vmatpush.msra.mxu0 %v827
  %1142 = vmatpush.msra.mxu0 %v825
  %1143 = vmatpush.msra.mxu0 %v823
  %1144 = vmatpush.msra.mxu0 %v821
  %1145 = vmatpush.msra.mxu0 %v819
  %1146 = vmatpush.msra.mxu0 %v817
  %1147 = vmatpush.msra.mxu0 %v815
  %1148 = vmatmul.f32.gmra.mxu0 %v808
  %v1149 = vpop.f32.mrf.mxu0
  %v1150 = vadd.f32 %v1009, %v1149
  %1151 = vdwg.mxu0
  %1152 = vmatpush.msra.mxu0 %v877
  %1153 = vmatpush.msra.mxu0 %v875
  %1154 = vmatpush.msra.mxu0 %v873
  %1155 = vmatpush.msra.mxu0 %v871
  %1156 = vmatpush.msra.mxu0 %v869
  %1157 = vmatpush.msra.mxu0 %v867
  %1158 = vmatpush.msra.mxu0 %v865
  %1159 = vmatpush.msra.mxu0 %v863
  %1160 = vmatpush.msra.mxu0 %v861
  %1161 = vmatpush.msra.mxu0 %v859
  %1162 = vmatpush.msra.mxu0 %v857
  %1163 = vmatpush.msra.mxu0 %v855
  %1164 = vmatpush.msra.mxu0 %v853
  %1165 = vmatpush.msra.mxu0 %v851
  %1166 = vmatpush.msra.mxu0 %v849
  %1167 = vmatpush.msra.mxu0 %v847
  %1168 = vmatmul.f32.gmra.mxu0 %v809
  %v1169 = vpop.f32.mrf.mxu0
  %v1170 = vadd.f32 %v1150, %v1169
  %1171 = vdwg.mxu0
  %1172 = vmatpush.msra.mxu0 %v909
  %1173 = vmatpush.msra.mxu0 %v907
  %1174 = vmatpush.msra.mxu0 %v905
  %1175 = vmatpush.msra.mxu0 %v903
  %1176 = vmatpush.msra.mxu0 %v901
  %1177 = vmatpush.msra.mxu0 %v899
  %1178 = vmatpush.msra.mxu0 %v897
  %1179 = vmatpush.msra.mxu0 %v895
  %1180 = vmatpush.msra.mxu0 %v893
  %1181 = vmatpush.msra.mxu0 %v891
  %1182 = vmatpush.msra.mxu0 %v889
  %1183 = vmatpush.msra.mxu0 %v887
  %1184 = vmatpush.msra.mxu0 %v885
  %1185 = vmatpush.msra.mxu0 %v883
  %1186 = vmatpush.msra.mxu0 %v881
  %1187 = vmatpush.msra.mxu0 %v879
  %1188 = vmatmul.f32.gmra.mxu0 %v810
  %v1189 = vpop.f32.mrf.mxu0
  %v1190 = vadd.f32 %v1170, %v1189
  %1191 = vdwg.mxu0
  %1192 = vmatpush.msra.mxu0 %v941
  %1193 = vmatpush.msra.mxu0 %v939
  %1194 = vmatpush.msra.mxu0 %v937
  %1195 = vmatpush.msra.mxu0 %v935
  %1196 = vmatpush.msra.mxu0 %v933
  %1197 = vmatpush.msra.mxu0 %v931
  %1198 = vmatpush.msra.mxu0 %v929
  %1199 = vmatpush.msra.mxu0 %v927
  %1200 = vmatpush.msra.mxu0 %v925
  %1201 = vmatpush.msra.mxu0 %v923
  %1202 = vmatpush.msra.mxu0 %v921
  %1203 = vmatpush.msra.mxu0 %v919
  %1204 = vmatpush.msra.mxu0 %v917
  %1205 = vmatpush.msra.mxu0 %v915
  %1206 = vmatpush.msra.mxu0 %v913
  %1207 = vmatpush.msra.mxu0 %v911
  %1208 = vmatmul.f32.gmra.mxu0 %v811
  %v1209 = vpop.f32.mrf.mxu0
  %v1210 = vadd.f32 %v1190, %v1209
  %1211 = vdwg.mxu0
  %1212 = vmatpush.msra.mxu0 %v973
  %1213 = vmatpush.msra.mxu0 %v971
  %1214 = vmatpush.msra.mxu0 %v969
  %1215 = vmatpush.msra.mxu0 %v967
  %1216 = vmatpush.msra.mxu0 %v965
  %1217 = vmatpush.msra.mxu0 %v963
  %1218 = vmatpush.msra.mxu0 %v961
  %1219 = vmatpush.msra.mxu0 %v959
  %1220 = vmatpush.msra.mxu0 %v957
  %1221 = vmatpush.msra.mxu0 %v955
  %1222 = vmatpush.msra.mxu0 %v953
  %1223 = vmatpush.msra.mxu0 %v951
  %1224 = vmatpush.msra.mxu0 %v949
  %1225 = vmatpush.msra.mxu0 %v947
  %1226 = vmatpush.msra.mxu0 %v945
  %1227 = vmatpush.msra.mxu0 %v943
  %1228 = vmatmul.f32.gmra.mxu0 %v812
  %v1229 = vpop.f32.mrf.mxu0
  %v1230 = vadd.f32 %v1210, %v1229
  %1231 = vdwg.mxu0
  %1232 = vmatpush.msra.mxu0 %v1005
  %1233 = vmatpush.msra.mxu0 %v1003
  %1234 = vmatpush.msra.mxu0 %v1001
  %1235 = vmatpush.msra.mxu0 %v999
  %1236 = vmatpush.msra.mxu0 %v997
  %1237 = vmatpush.msra.mxu0 %v995
  %1238 = vmatpush.msra.mxu0 %v993
  %1239 = vmatpush.msra.mxu0 %v991
  %1240 = vmatpush.msra.mxu0 %v989
  %1241 = vmatpush.msra.mxu0 %v987
  %1242 = vmatpush.msra.mxu0 %v985
  %1243 = vmatpush.msra.mxu0 %v983
  %1244 = vmatpush.msra.mxu0 %v981
  %1245 = vmatpush.msra.mxu0 %v979
  %1246 = vmatpush.msra.mxu0 %v977
  %1247 = vmatpush.msra.mxu0 %v975
  %1248 = vmatmul.f32.gmra.mxu0 %v813
  %v1249 = vpop.f32.mrf.mxu0
  %v1250 = vadd.f32 %v1230, %v1249
  %1251 = vdwg.mxu0
  %v1252 = vmax.f32 %v1130, 0.0
  %v1253 = vmax.f32 %v1250, 0.0
  %v1254 = vld [vmem:[%s7] sm:$0xff]
  %v1255 = vld [vmem:[%s7 + $0x8] sm:$0xff]
  %v1256 = vld [vmem:[%s7 + $0x10] sm:$0xff]
  %v1257 = vld [vmem:[%s7 + $0x18] sm:$0xff]
  %v1258 = vld [vmem:[%s7 + $0x20] sm:$0xff]
  %v1259 = vld [vmem:[%s7 + $0x28] sm:$0xff]
  %v1260 = vld [vmem:[%s7 + $0x30] sm:$0xff]
  %v1261 = vld [vmem:[%s7 + $0x38] sm:$0xff]
  %v1262 = vld [vmem:[%s7 + $0x40] sm:$0xff]
  %v1263 = vld [vmem:[%s7 + $0x48] sm:$0xff]
  %v1264 = vld [vmem:[%s7 + $0x50] sm:$0xff]
  %v1265 = vld [vmem:[%s7 + $0x58] sm:$0xff]
  %v1266 = vld [vmem:[%s7 + $0x60] sm:$0xff]
  %v1267 = vld [vmem:[%s7 + $0x68] sm:$0xff]
  %v1268 = vld [vmem:[%s7 + $0x70] sm:$0xff]
  %v1269 = vld [vmem:[%s7 + $0x78] sm:$0xff]
  %v1270 = vld [vmem:[%s7 + $0x80] sm:$0xff]
  %v1271 = vld [vmem:[%s7 + $0x88] sm:$0xff]
  %v1272 = vld [vmem:[%s7 + $0x90] sm:$0xff]
  %v1273 = vld [vmem:[%s7 + $0x98] sm:$0xff]
  %v1274 = vld [vmem:[%s7 + $0xa0] sm:$0xff]
  %v1275 = vld [vmem:[%s7 + $0xa8] sm:$0xff]
  %v1276 = vld [vmem:[%s7 + $0xb0] sm:$0xff]
  %v1277 = vld [vmem:[%s7 + $0xb8] sm:$0xff]
  %v1278 = vld [vmem:[%s7 + $0xc0] sm:$0xff]
  %v1279 = vld [vmem:[%s7 + $0xc8] sm:$0xff]
  %v1280 = vld [vmem:[%s7 + $0xd0] sm:$0xff]
  %v1281 = vld [vmem:[#allocation2] sm:$0x1]
  %v1283 = vperm.slane %v1281, 0
  %vm1285 = vcmask 719872
  %v1287 = vsel %vm1285, %v1253, 0
  %1289 = vmatpush.msra.mxu0 %v1269
  %1290 = vmatpush.msra.mxu0 %v1268
  %1291 = vmatpush.msra.mxu0 %v1267
  %1292 = vmatpush.msra.mxu0 %v1266
  %1293 = vmatpush.msra.mxu0 %v1265
  %1294 = vmatpush.msra.mxu0 %v1264
  %1295 = vmatpush.msra.mxu0 %v1263
  %1296 = vmatpush.msra.mxu0 %v1262
  %1297 = vmatpush.msra.mxu0 %v1261
  %1298 = vmatpush.msra.mxu0 %v1260
  %1299 = vmatpush.msra.mxu0 %v1259
  %1300 = vmatpush.msra.mxu0 %v1258
  %1301 = vmatpush.msra.mxu0 %v1257
  %1302 = vmatpush.msra.mxu0 %v1256
  %1303 = vmatpush.msra.mxu0 %v1255
  %1304 = vmatpush.msra.mxu0 %v1254
  %1305 = vmatmul.f32.gmra.mxu0 %v1252
  %v1306 = vpop.f32.mrf.mxu0
  %v1307 = vadd.f32 %v1283, %v1306
  %1308 = vdwg.mxu0
  %1309 = vmatpush.msra.mxu0 0.0
  %1310 = vmatpush.msra.mxu0 0.0
  %1311 = vmatpush.msra.mxu0 0.0
  %1312 = vmatpush.msra.mxu0 0.0
  %1313 = vmatpush.msra.mxu0 0.0
  %1314 = vmatpush.msra.mxu0 %v1280
  %1315 = vmatpush.msra.mxu0 %v1279
  %1316 = vmatpush.msra.mxu0 %v1278
  %1317 = vmatpush.msra.mxu0 %v1277
  %1318 = vmatpush.msra.mxu0 %v1276
  %1319 = vmatpush.msra.mxu0 %v1275
  %1320 = vmatpush.msra.mxu0 %v1274
  %1321 = vmatpush.msra.mxu0 %v1273
  %1322 = vmatpush.msra.mxu0 %v1272
  %1323 = vmatpush.msra.mxu0 %v1271
  %1324 = vmatpush.msra.mxu0 %v1270
  %1325 = vmatmul.f32.gmra.mxu0 %v1287
  %v1326 = vpop.f32.mrf.mxu0
  %v1327 = vadd.f32 %v1307, %v1326
  %1328 = vdwg.mxu0
  %vm1329 = vcmask 1024
  %1330 = vst.msk [vmem:[%s9] sm:$0x3] %vm1329, %v1327
  // Predicated region
  $region38: #{cnn_forward.1} parent=0 // pred_check
    _
  $region39: #{cnn_forward.1} parent=0 // pred_check_branch
    %1332 = sbr.rel (0) target = $region41
  $region40: #{cnn_forward.1} parent=0 // pred_region
    _
  $region41: #{cnn_forward.1} parent=0 // pred_fallthru
    _
  // Predicated region
  $region42: #{cnn_forward.1} parent=0 // pred_check
    _
  $region43: #{cnn_forward.1} parent=0 // pred_check_branch
    %1334 = sbr.rel (0) target = $region45
  $region44: #{cnn_forward.1} parent=0 // pred_region
    _
  $region45: #{cnn_forward.1} parent=0 // pred_fallthru
    _

</llo_original>
